<compile_context>
chip_gen: v6e
topology: v6e:2x2x1
jax: 0.10.0
libtpu: 0.0.40
codegen_flags: <defaults>
</compile_context>

<pallas_src>
import math

import jax
import jax.numpy as jnp
from jax import lax
from jax.experimental import pallas as pl
from jax.experimental.pallas import tpu as pltpu

N_SYM = 4
S_VALS = (-3.0, -1.0, 1.0, 3.0)
# The algebraic pruning below (beta_0 = 0, shared Bo for k in {1,2}, gamma_3 = 6*SA)
# is specific to this constellation -- guard it (review correctness concern 3).
assert S_VALS == (-3.0, -1.0, 1.0, 3.0), "beta/gamma pruning assumes s = (-3,-1,1,3)"


def _recip(x):
    """1/x via EUP reciprocal seed + ONE Newton step (~1e-7 rel.).

    Keeps divides off the saturated VALU slot; one step is enough (review item 6)."""
    r = pl.reciprocal(x, approx=True)
    return r * (2.0 - x * r)


def dbp_kernel(nv_ref, damp_ref, y_ref, H_ref, P_ref, ones_ref, exp_ref,
               P_out_ref, gamma_out_ref):
    # nv_ref, damp_ref : SMEM (1,) f32 scalars
    # y_ref            : VMEM (G, 2N, B_blk)  compact y (one value per batch element)
    # H_ref            : VMEM (G, 2N, L)      L = B_blk * 2M, multiple of 128
    # P_ref            : VMEM (G, 4, 2N, L)   symbol axis unrolled
    # ones_ref         : VMEM (L, L) f32      block-diagonal ones (grid-invariant)
    # exp_ref          : VMEM (B_blk, L) f32  lane expander: E[i, j] = (j // 2M == i)
    # P_out_ref        : VMEM (G, 4, 2N, L)
    # gamma_out_ref    : VMEM (G, 4, L)
    nv = nv_ref[0]
    damp = damp_ref[0]
    omd = 1.0 - damp
    ones_bd = ones_ref[...]
    E = exp_ref[...]
    G = H_ref.shape[0]
    twoN = H_ref.shape[1]

    def body(g, carry):
        H = H_ref[g]                                     # (2N, L)
        H2 = H * H
        # expand compact y to lane width on the otherwise-idle MXU
        yw = jnp.dot(y_ref[g], E, preferred_element_type=jnp.float32)   # (2N, L)

        Pg = P_ref[g]                                    # (4, 2N, L)
        P0, P1, P2, P3 = Pg[0], Pg[1], Pg[2], Pg[3]

        # P @ s and P @ s^2 for s = (-3, -1, 1, 3)
        Ps = 3.0 * (P3 - P0) + (P2 - P1)
        Ps2 = 9.0 * (P3 + P0) + (P2 + P1)

        HPs = H * Ps
        vt = H2 * (Ps2 - Ps * Ps)

        # leave-one-out sums over the transmit axis, per batch lane segment:
        # one fused f32 MXU matmul against the block-diagonal ones (review items 7/8)
        sums = jnp.dot(jnp.concatenate([HPs, vt], axis=0), ones_bd,
                       preferred_element_type=jnp.float32)               # (2*2N, L)
        mean_z = sums[:twoN] - HPs
        var_z = jnp.maximum(sums[twoN:] - vt + nv, 1e-25)   # clamp (padded lanes / nv=0)
        inv_var = _recip(var_z)

        # beta_k = (s_k - s0)*Ao + [k in {1,2}]*Bo  (beta_0 == 0)
        Ao = H * (yw - mean_z) * inv_var                 # = 2H(y - mean_z)/(2 var_z)
        Bo = 4.0 * H2 * inv_var                          # = -H^2(s_k^2 - 9)/(2 var_z)

        # column sums over the receive (sublane) axis -> gamma building blocks
        SA = jnp.sum(Ao, axis=0, keepdims=True)          # (1, L)
        SB = jnp.sum(Bo, axis=0, keepdims=True)          # (1, L)

        GA = SA - Ao                                     # alpha = gamma - beta
        GB = SB - Bo
        a1 = 2.0 * GA + GB
        a2 = 4.0 * GA + GB
        a3 = 6.0 * GA
        # a0 == 0 exactly

        amax = jnp.maximum(jnp.maximum(a1, a2), jnp.maximum(a3, 0.0))
        e0 = jnp.exp(-amax)
        e1 = jnp.exp(a1 - amax)
        e2 = jnp.exp(a2 - amax)
        e3 = jnp.exp(a3 - amax)
        inv_den = _recip(e0 + e1 + e2 + e3)

        P_out_ref[g] = jnp.stack(
            [omd * (e0 * inv_den) + damp * P0,
             omd * (e1 * inv_den) + damp * P1,
             omd * (e2 * inv_den) + damp * P2,
             omd * (e3 * inv_den) + damp * P3], axis=0)

        # gamma_k = colsum(beta_k): 0, 2SA+SB, 4SA+SB, 6SA  -- one (4, L) store
        gamma_out_ref[g] = jnp.concatenate(
            [jnp.zeros_like(SA), 2.0 * SA + SB, 4.0 * SA + SB, 6.0 * SA], axis=0)
        return carry

    lax.fori_loop(0, G, body, None, unroll=2)


@jax.jit
def dbp_layer(y, H, P, noise_var, damp):
    """y: (B, 2N, 1), H: (B, 2N, 2M), P: (B, 2N, 2M, 4), noise_var/damp: scalars.
    Returns (P1 (B, 2N, 2M, 4), gamma (B, 1, 2M, 4)), matching torch DBP_layer."""
    B, twoN, twoM, S = P.shape
    assert S == N_SYM
    f32 = jnp.float32

    # --- lane-dense batch packing: L is an exact multiple of 128 (review item 9) ---
    L = math.lcm(twoM, 128)
    B_blk = L // twoM
    Bg_raw = -(-B // B_blk)

    # --- G packed-batch groups per grid step (review items 1-3) ---
    bytes_per_group = 4 * (twoN * B_blk + twoN * L + 2 * N_SYM * twoN * L + N_SYM * L)
    G = max(1, min(64, (8 << 20) // (2 * bytes_per_group)))   # ~8 MiB double-buffered
    if Bg_raw >= 2:
        G = min(G, -(-Bg_raw // 2))   # keep grid >= 2 so both TensorCores get work
    else:
        G = 1
    num_blocks = -(-Bg_raw // G)
    Bg = num_blocks * G
    Bp = Bg * B_blk
    pad = Bp - B

    Hf = H.astype(f32)
    yf = y.astype(f32).reshape(B, twoN)                  # compact y, no 2M broadcast
    Pf = P.astype(f32)
    if pad:
        Hf = jnp.concatenate([Hf, jnp.zeros((pad, twoN, twoM), f32)], axis=0)
        yf = jnp.concatenate([yf, jnp.zeros((pad, twoN), f32)], axis=0)
        Pf = jnp.concatenate([Pf, jnp.zeros((pad, twoN, twoM, N_SYM), f32)], axis=0)

    # NOTE(review item 4): for iterative BP (stacked DBP layers) hoist this pack and
    # the final unpack out of the per-layer call and keep the packed (Bg, 4, 2N, L)
    # P buffer (and H/y/ones/expand) across layers to avoid per-layer HBM round trips.
    H_p = Hf.reshape(Bg, B_blk, twoN, twoM).transpose(0, 2, 1, 3).reshape(Bg, twoN, L)
    y_p = yf.reshape(Bg, B_blk, twoN).transpose(0, 2, 1)           # (Bg, 2N, B_blk)
    P_p = (Pf.reshape(Bg, B_blk, twoN, twoM, N_SYM)
             .transpose(0, 4, 2, 1, 3)                             # (Bg, 4, 2N, B_blk, 2M)
             .reshape(Bg, N_SYM, twoN, L))

    # grid-invariant helpers (DMA'd once): block-diagonal ones + 0/1 lane expander
    ones_bd = jnp.kron(jnp.eye(B_blk, dtype=f32), jnp.ones((twoM, twoM), f32))  # (L, L)
    expand = jnp.kron(jnp.eye(B_blk, dtype=f32), jnp.ones((1, twoM), f32))      # (B_blk, L)

    nv = jnp.asarray(noise_var, f32).reshape(1)
    dp = jnp.asarray(damp, f32).reshape(1)

    P_out_p, gamma_p = pl.pallas_call(
        dbp_kernel,
        out_shape=(
            jax.ShapeDtypeStruct((Bg, N_SYM, twoN, L), f32),
            jax.ShapeDtypeStruct((Bg, N_SYM, L), f32),
        ),
        grid=(num_blocks,),
        in_specs=[
            pl.BlockSpec(memory_space=pltpu.MemorySpace.SMEM),               # noise_var
            pl.BlockSpec(memory_space=pltpu.MemorySpace.SMEM),               # damp
            pl.BlockSpec((G, twoN, B_blk), lambda b: (b, 0, 0)),             # y (compact)
            pl.BlockSpec((G, twoN, L), lambda b: (b, 0, 0)),                 # H (packed)
            pl.BlockSpec((G, N_SYM, twoN, L), lambda b: (b, 0, 0, 0)),       # P (packed)
            pl.BlockSpec((L, L), lambda b: (0, 0)),                          # ones (invariant)
            pl.BlockSpec((B_blk, L), lambda b: (0, 0)),                      # expander (invariant)
        ],
        out_specs=(
            pl.BlockSpec((G, N_SYM, twoN, L), lambda b: (b, 0, 0, 0)),
            pl.BlockSpec((G, N_SYM, L), lambda b: (b, 0, 0)),
        ),
        compiler_params=pltpu.CompilerParams(dimension_semantics=("parallel",)),
    )(nv, dp, y_p, H_p, P_p, ones_bd, expand)

    # --- unpack back to the PyTorch layout ---
    P_out = (P_out_p.reshape(Bg, N_SYM, twoN, B_blk, twoM)
                    .transpose(0, 3, 2, 4, 1)            # (Bg, B_blk, 2N, 2M, 4)
                    .reshape(Bp, twoN, twoM, N_SYM))[:B]
    gamma = (gamma_p.reshape(Bg, N_SYM, B_blk, twoM)
                    .transpose(0, 2, 3, 1)               # (Bg, B_blk, 2M, 4)
                    .reshape(Bp, twoM, N_SYM))[:B][:, None]
    return P_out, gamma


# ---------------- pure-JAX reference (mirrors the PyTorch forward) ----------------
def _dbp_layer_ref(y, H, P, noise_var, damp):
    s = jnp.array(S_VALS, jnp.float32)
    Ps = sum(P[..., k] * S_VALS[k] for k in range(N_SYM))
    Ps2 = sum(P[..., k] * (S_VALS[k] ** 2) for k in range(N_SYM))
    mean_z = jnp.sum(H * Ps, axis=2, keepdims=True) - H * Ps
    vt = H ** 2 * (Ps2 - Ps ** 2)
    var_z = jnp.sum(vt, axis=2, keepdims=True) - vt + noise_var
    beta = ((2.0 * H * (y - mean_z))[..., None] * (s - s[0])
            - (H ** 2)[..., None] * (s ** 2 - s[0] ** 2)) / (2.0 * var_z[..., None])
    gamma = jnp.sum(beta, axis=1, keepdims=True)
    alpha = gamma - beta
    post = jax.nn.softmax(alpha, axis=3)
    P1 = (1.0 - damp) * post + damp * P
    return P1, gamma


if __name__ == "__main__":
    M, N, B = 4, 4, 36               # 2M = 2N = 8; B=36 exercises padding, G=2, grid=2
    twoM, twoN = 2 * M, 2 * N
    key = jax.random.PRNGKey(0)
    k1, k2, k3 = jax.random.split(key, 3)

    H = jax.random.normal(k1, (B, twoN, twoM), jnp.float32)
    y = jax.random.normal(k2, (B, twoN, 1), jnp.float32)
    P0 = jax.random.uniform(k3, (B, twoN, twoM, N_SYM), jnp.float32,
                            minval=0.1, maxval=1.0)
    noise_var = 0.1
    damp = 0.5                       # nn.Parameter init value in DBP_layer.__init__

    P_out, gamma = dbp_layer(y, H, P0, noise_var, damp)
    jax.block_until_ready((P_out, gamma))

    P_ref, gamma_ref = _dbp_layer_ref(y, H, P0, jnp.float32(noise_var),
                                      jnp.float32(damp))
    assert P_out.shape == (B, twoN, twoM, N_SYM)
    assert gamma.shape == (B, 1, twoM, N_SYM)
    assert jnp.allclose(P_out, P_ref, rtol=5e-4, atol=5e-4), \
        float(jnp.max(jnp.abs(P_out - P_ref)))
    assert jnp.allclose(gamma, gamma_ref, rtol=1e-3, atol=2e-3), \
        float(jnp.max(jnp.abs(gamma - gamma_ref)))

    print("KERNEL_OK")
</pallas_src>

<mosaic_0001>
module attributes {stable_mosaic.version = 11 : i64} {
  func.func @dbp_kernel(%arg0: i32, %arg1: memref<1xf32, #tpu.memory_space<smem>>, %arg2: memref<1xf32, #tpu.memory_space<smem>>, %arg3: memref<2x8x16xf32, #tpu.memory_space<vmem>>, %arg4: memref<2x8x128xf32, #tpu.memory_space<vmem>>, %arg5: memref<2x4x8x128xf32, #tpu.memory_space<vmem>>, %arg6: memref<128x128xf32, #tpu.memory_space<vmem>>, %arg7: memref<16x128xf32, #tpu.memory_space<vmem>>, %arg8: memref<2x4x8x128xf32, #tpu.memory_space<vmem>>, %arg9: memref<2x4x128xf32, #tpu.memory_space<vmem>>) attributes {dimension_semantics = [#tpu.dimension_semantics<parallel>], iteration_bounds = array<i64: 2>, scalar_prefetch = 0 : i64, scratch_operands = 0 : i64, tpu.core_type = #tpu.core_type<tc>, window_params = [{transform_indices = @transform_0, window_bounds = array<i64: 1>}, {transform_indices = @transform_1, window_bounds = array<i64: 1>}, {transform_indices = @transform_2, window_bounds = array<i64: 2, 8, 16>}, {transform_indices = @transform_3, window_bounds = array<i64: 2, 8, 128>}, {transform_indices = @transform_4, window_bounds = array<i64: 2, 4, 8, 128>}, {pipeline_mode = #tpu.pipeline_mode<synchronous>, transform_indices = @transform_5, window_bounds = array<i64: 128, 128>}, {pipeline_mode = #tpu.pipeline_mode<synchronous>, transform_indices = @transform_6, window_bounds = array<i64: 16, 128>}, {transform_indices = @transform_7, window_bounds = array<i64: 2, 4, 8, 128>}, {transform_indices = @transform_8, window_bounds = array<i64: 2, 4, 128>}]} {
    %c0 = arith.constant 0 : index
    %0 = memref.load %arg1[%c0] : memref<1xf32, #tpu.memory_space<smem>>
    %c0_0 = arith.constant 0 : index
    %1 = memref.load %arg2[%c0_0] : memref<1xf32, #tpu.memory_space<smem>>
    %cst = arith.constant 1.000000e+00 : f32
    %2 = arith.subf %cst, %1 : f32
    %c0_1 = arith.constant 0 : index
    %c0_2 = arith.constant 0 : index
    %3 = vector.load %arg6[%c0_1, %c0_2] : memref<128x128xf32, #tpu.memory_space<vmem>>, vector<128x128xf32>
    %c0_3 = arith.constant 0 : index
    %c0_4 = arith.constant 0 : index
    %4 = vector.load %arg7[%c0_3, %c0_4] : memref<16x128xf32, #tpu.memory_space<vmem>>, vector<16x128xf32>
    %c0_i32 = arith.constant 0 : i32
    %5 = arith.index_cast %c0_i32 : i32 to index
    %c0_5 = arith.constant 0 : index
    %c0_6 = arith.constant 0 : index
    %6 = vector.load %arg4[%5, %c0_5, %c0_6] : memref<2x8x128xf32, #tpu.memory_space<vmem>>, vector<1x8x128xf32>
    %7 = vector.shape_cast %6 : vector<1x8x128xf32> to vector<8x128xf32>
    %8 = arith.mulf %7, %7 : vector<8x128xf32>
    %9 = arith.index_cast %c0_i32 : i32 to index
    %c0_7 = arith.constant 0 : index
    %c0_8 = arith.constant 0 : index
    %10 = vector.load %arg3[%9, %c0_7, %c0_8] : memref<2x8x16xf32, #tpu.memory_space<vmem>>, vector<1x8x16xf32>
    %11 = vector.shape_cast %10 : vector<1x8x16xf32> to vector<8x16xf32>
    %cst_9 = arith.constant dense<0.000000e+00> : vector<8x128xf32>
    %12 = tpu.matmul %11, %4, %cst_9 {dimension_numbers = #tpu.dot_dimension_numbers<[1], [0], [0], [1], [0, 0, 1, 1], [], []>} : vector<8x16xf32>, vector<16x128xf32>, vector<8x128xf32> -> vector<8x128xf32>
    %13 = arith.index_cast %c0_i32 : i32 to index
    %c0_10 = arith.constant 0 : index
    %c0_11 = arith.constant 0 : index
    %c0_12 = arith.constant 0 : index
    %14 = vector.load %arg5[%13, %c0_10, %c0_11, %c0_12] : memref<2x4x8x128xf32, #tpu.memory_space<vmem>>, vector<1x4x8x128xf32>
    %15 = vector.shape_cast %14 : vector<1x4x8x128xf32> to vector<4x8x128xf32>
    %16 = vector.extract_strided_slice %15 {offsets = [0, 0, 0], sizes = [1, 8, 128], strides = [1, 1, 1]} : vector<4x8x128xf32> to vector<1x8x128xf32>
    %17 = vector.shape_cast %16 : vector<1x8x128xf32> to vector<8x128xf32>
    %18 = vector.extract_strided_slice %15 {offsets = [1, 0, 0], sizes = [1, 8, 128], strides = [1, 1, 1]} : vector<4x8x128xf32> to vector<1x8x128xf32>
    %19 = vector.shape_cast %18 : vector<1x8x128xf32> to vector<8x128xf32>
    %20 = vector.extract_strided_slice %15 {offsets = [2, 0, 0], sizes = [1, 8, 128], strides = [1, 1, 1]} : vector<4x8x128xf32> to vector<1x8x128xf32>
    %21 = vector.shape_cast %20 : vector<1x8x128xf32> to vector<8x128xf32>
    %22 = vector.extract_strided_slice %15 {offsets = [3, 0, 0], sizes = [1, 8, 128], strides = [1, 1, 1]} : vector<4x8x128xf32> to vector<1x8x128xf32>
    %23 = vector.shape_cast %22 : vector<1x8x128xf32> to vector<8x128xf32>
    %24 = arith.subf %23, %17 : vector<8x128xf32>
    %cst_13 = arith.constant 3.000000e+00 : f32
    %25 = vector.broadcast %cst_13 : f32 to vector<8x128xf32>
    %26 = arith.mulf %25, %24 : vector<8x128xf32>
    %27 = arith.subf %21, %19 : vector<8x128xf32>
    %28 = arith.addf %26, %27 : vector<8x128xf32>
    %29 = arith.addf %23, %17 : vector<8x128xf32>
    %cst_14 = arith.constant 9.000000e+00 : f32
    %30 = vector.broadcast %cst_14 : f32 to vector<8x128xf32>
    %31 = arith.mulf %30, %29 : vector<8x128xf32>
    %32 = arith.addf %21, %19 : vector<8x128xf32>
    %33 = arith.addf %31, %32 : vector<8x128xf32>
    %34 = arith.mulf %7, %28 : vector<8x128xf32>
    %35 = arith.mulf %28, %28 : vector<8x128xf32>
    %36 = arith.subf %33, %35 : vector<8x128xf32>
    %37 = arith.mulf %8, %36 : vector<8x128xf32>
    %38 = tpu.concatenate %34, %37 in 0 : vector<8x128xf32>, vector<8x128xf32> -> vector<16x128xf32>
    %cst_15 = arith.constant dense<0.000000e+00> : vector<16x128xf32>
    %39 = tpu.matmul %38, %3, %cst_15 {dimension_numbers = #tpu.dot_dimension_numbers<[1], [0], [0], [1], [0, 0, 1, 1], [], []>} : vector<16x128xf32>, vector<128x128xf32>, vector<16x128xf32> -> vector<16x128xf32>
    %40 = vector.extract_strided_slice %39 {offsets = [0, 0], sizes = [8, 128], strides = [1, 1]} : vector<16x128xf32> to vector<8x128xf32>
    %41 = arith.subf %40, %34 : vector<8x128xf32>
    %42 = vector.extract_strided_slice %39 {offsets = [8, 0], sizes = [8, 128], strides = [1, 1]} : vector<16x128xf32> to vector<8x128xf32>
    %43 = arith.subf %42, %37 : vector<8x128xf32>
    %44 = vector.broadcast %0 : f32 to vector<8x128xf32>
    %45 = arith.addf %43, %44 : vector<8x128xf32>
    %cst_16 = arith.constant 1.000000e-25 : f32
    %46 = vector.broadcast %cst_16 : f32 to vector<8x128xf32>
    %47 = arith.maximumf %45, %46 : vector<8x128xf32>
    %48 = tpu.reciprocal %47 {approx = true} : vector<8x128xf32> -> vector<8x128xf32>
    %49 = arith.mulf %47, %48 : vector<8x128xf32>
    %cst_17 = arith.constant 2.000000e+00 : f32
    %50 = vector.broadcast %cst_17 : f32 to vector<8x128xf32>
    %51 = arith.subf %50, %49 : vector<8x128xf32>
    %52 = arith.mulf %48, %51 : vector<8x128xf32>
    %53 = arith.subf %12, %41 : vector<8x128xf32>
    %54 = arith.mulf %7, %53 : vector<8x128xf32>
    %55 = arith.mulf %54, %52 : vector<8x128xf32>
    %cst_18 = arith.constant 4.000000e+00 : f32
    %56 = vector.broadcast %cst_18 : f32 to vector<8x128xf32>
    %57 = arith.mulf %56, %8 : vector<8x128xf32>
    %58 = arith.mulf %57, %52 : vector<8x128xf32>
    %cst_19 = arith.constant dense<0.000000e+00> : vector<128xf32>
    %59 = vector.multi_reduction <add>, %55, %cst_19 [0] : vector<8x128xf32> to vector<128xf32>
    %60 = vector.shape_cast %59 : vector<128xf32> to vector<1x128xf32>
    %cst_20 = arith.constant dense<0.000000e+00> : vector<128xf32>
    %61 = vector.multi_reduction <add>, %58, %cst_20 [0] : vector<8x128xf32> to vector<128xf32>
    %62 = vector.shape_cast %61 : vector<128xf32> to vector<1x128xf32>
    %63 = vector.broadcast %60 : vector<1x128xf32> to vector<8x128xf32>
    %64 = arith.subf %63, %55 : vector<8x128xf32>
    %65 = vector.broadcast %62 : vector<1x128xf32> to vector<8x128xf32>
    %66 = arith.subf %65, %58 : vector<8x128xf32>
    %cst_21 = arith.constant 2.000000e+00 : f32
    %67 = vector.broadcast %cst_21 : f32 to vector<8x128xf32>
    %68 = arith.mulf %67, %64 : vector<8x128xf32>
    %69 = arith.addf %68, %66 : vector<8x128xf32>
    %cst_22 = arith.constant 4.000000e+00 : f32
    %70 = vector.broadcast %cst_22 : f32 to vector<8x128xf32>
    %71 = arith.mulf %70, %64 : vector<8x128xf32>
    %72 = arith.addf %71, %66 : vector<8x128xf32>
    %cst_23 = arith.constant 6.000000e+00 : f32
    %73 = vector.broadcast %cst_23 : f32 to vector<8x128xf32>
    %74 = arith.mulf %73, %64 : vector<8x128xf32>
    %75 = arith.maximumf %69, %72 : vector<8x128xf32>
    %cst_24 = arith.constant 0.000000e+00 : f32
    %76 = vector.broadcast %cst_24 : f32 to vector<8x128xf32>
    %77 = arith.maximumf %74, %76 : vector<8x128xf32>
    %78 = arith.maximumf %75, %77 : vector<8x128xf32>
    %cst_25 = arith.constant 0.000000e+00 : f32
    %79 = vector.broadcast %cst_25 : f32 to vector<8x128xf32>
    %80 = arith.subf %79, %78 : vector<8x128xf32>
    %81 = math.exp %80 : vector<8x128xf32>
    %82 = arith.subf %69, %78 : vector<8x128xf32>
    %83 = math.exp %82 : vector<8x128xf32>
    %84 = arith.subf %72, %78 : vector<8x128xf32>
    %85 = math.exp %84 : vector<8x128xf32>
    %86 = arith.subf %74, %78 : vector<8x128xf32>
    %87 = math.exp %86 : vector<8x128xf32>
    %88 = arith.addf %81, %83 : vector<8x128xf32>
    %89 = arith.addf %88, %85 : vector<8x128xf32>
    %90 = arith.addf %89, %87 : vector<8x128xf32>
    %91 = tpu.reciprocal %90 {approx = true} : vector<8x128xf32> -> vector<8x128xf32>
    %92 = arith.mulf %90, %91 : vector<8x128xf32>
    %cst_26 = arith.constant 2.000000e+00 : f32
    %93 = vector.broadcast %cst_26 : f32 to vector<8x128xf32>
    %94 = arith.subf %93, %92 : vector<8x128xf32>
    %95 = arith.mulf %91, %94 : vector<8x128xf32>
    %96 = arith.mulf %81, %95 : vector<8x128xf32>
    %97 = vector.broadcast %2 : f32 to vector<8x128xf32>
    %98 = arith.mulf %97, %96 : vector<8x128xf32>
    %99 = vector.broadcast %1 : f32 to vector<8x128xf32>
    %100 = arith.mulf %99, %17 : vector<8x128xf32>
    %101 = arith.addf %98, %100 : vector<8x128xf32>
    %102 = arith.mulf %83, %95 : vector<8x128xf32>
    %103 = vector.broadcast %2 : f32 to vector<8x128xf32>
    %104 = arith.mulf %103, %102 : vector<8x128xf32>
    %105 = vector.broadcast %1 : f32 to vector<8x128xf32>
    %106 = arith.mulf %105, %19 : vector<8x128xf32>
    %107 = arith.addf %104, %106 : vector<8x128xf32>
    %108 = arith.mulf %85, %95 : vector<8x128xf32>
    %109 = vector.broadcast %2 : f32 to vector<8x128xf32>
    %110 = arith.mulf %109, %108 : vector<8x128xf32>
    %111 = vector.broadcast %1 : f32 to vector<8x128xf32>
    %112 = arith.mulf %111, %21 : vector<8x128xf32>
    %113 = arith.addf %110, %112 : vector<8x128xf32>
    %114 = arith.mulf %87, %95 : vector<8x128xf32>
    %115 = vector.broadcast %2 : f32 to vector<8x128xf32>
    %116 = arith.mulf %115, %114 : vector<8x128xf32>
    %117 = vector.broadcast %1 : f32 to vector<8x128xf32>
    %118 = arith.mulf %117, %23 : vector<8x128xf32>
    %119 = arith.addf %116, %118 : vector<8x128xf32>
    %120 = vector.shape_cast %101 : vector<8x128xf32> to vector<1x8x128xf32>
    %121 = vector.shape_cast %107 : vector<8x128xf32> to vector<1x8x128xf32>
    %122 = vector.shape_cast %113 : vector<8x128xf32> to vector<1x8x128xf32>
    %123 = vector.shape_cast %119 : vector<8x128xf32> to vector<1x8x128xf32>
    %124 = tpu.concatenate %120, %121, %122, %123 in 0 : vector<1x8x128xf32>, vector<1x8x128xf32>, vector<1x8x128xf32>, vector<1x8x128xf32> -> vector<4x8x128xf32>
    %125 = arith.index_cast %c0_i32 : i32 to index
    %c0_27 = arith.constant 0 : index
    %c0_28 = arith.constant 0 : index
    %c0_29 = arith.constant 0 : index
    %126 = vector.load %arg8[%125, %c0_27, %c0_28, %c0_29] : memref<2x4x8x128xf32, #tpu.memory_space<vmem>>, vector<1x4x8x128xf32>
    %127 = vector.shape_cast %126 : vector<1x4x8x128xf32> to vector<4x8x128xf32>
    %128 = vector.shape_cast %124 : vector<4x8x128xf32> to vector<1x4x8x128xf32>
    tpu.vector_store %arg8[%125, %c0_27, %c0_28, %c0_29], %128 {strides = array<i32>} : memref<2x4x8x128xf32, #tpu.memory_space<vmem>>, vector<1x4x8x128xf32>,
    %cst_30 = arith.constant 0.000000e+00 : f32
    %129 = vector.broadcast %cst_30 : f32 to vector<1x128xf32>
    %cst_31 = arith.constant 2.000000e+00 : f32
    %130 = vector.broadcast %cst_31 : f32 to vector<1x128xf32>
    %131 = arith.mulf %130, %60 : vector<1x128xf32>
    %132 = arith.addf %131, %62 : vector<1x128xf32>
    %cst_32 = arith.constant 4.000000e+00 : f32
    %133 = vector.broadcast %cst_32 : f32 to vector<1x128xf32>
    %134 = arith.mulf %133, %60 : vector<1x128xf32>
    %135 = arith.addf %134, %62 : vector<1x128xf32>
    %cst_33 = arith.constant 6.000000e+00 : f32
    %136 = vector.broadcast %cst_33 : f32 to vector<1x128xf32>
    %137 = arith.mulf %136, %60 : vector<1x128xf32>
    %138 = tpu.concatenate %129, %132, %135, %137 in 0 : vector<1x128xf32>, vector<1x128xf32>, vector<1x128xf32>, vector<1x128xf32> -> vector<4x128xf32>
    %139 = arith.index_cast %c0_i32 : i32 to index
    %c0_34 = arith.constant 0 : index
    %c0_35 = arith.constant 0 : index
    %140 = vector.load %arg9[%139, %c0_34, %c0_35] : memref<2x4x128xf32, #tpu.memory_space<vmem>>, vector<1x4x128xf32>
    %141 = vector.shape_cast %140 : vector<1x4x128xf32> to vector<4x128xf32>
    %142 = vector.shape_cast %138 : vector<4x128xf32> to vector<1x4x128xf32>
    tpu.vector_store %arg9[%139, %c0_34, %c0_35], %142 {strides = array<i32>} : memref<2x4x128xf32, #tpu.memory_space<vmem>>, vector<1x4x128xf32>,
    %c1_i32 = arith.constant 1 : i32
    %143 = arith.index_cast %c1_i32 : i32 to index
    %c0_36 = arith.constant 0 : index
    %c0_37 = arith.constant 0 : index
    %144 = vector.load %arg4[%143, %c0_36, %c0_37] : memref<2x8x128xf32, #tpu.memory_space<vmem>>, vector<1x8x128xf32>
    %145 = vector.shape_cast %144 : vector<1x8x128xf32> to vector<8x128xf32>
    %146 = arith.mulf %145, %145 : vector<8x128xf32>
    %147 = arith.index_cast %c1_i32 : i32 to index
    %c0_38 = arith.constant 0 : index
    %c0_39 = arith.constant 0 : index
    %148 = vector.load %arg3[%147, %c0_38, %c0_39] : memref<2x8x16xf32, #tpu.memory_space<vmem>>, vector<1x8x16xf32>
    %149 = vector.shape_cast %148 : vector<1x8x16xf32> to vector<8x16xf32>
    %cst_40 = arith.constant dense<0.000000e+00> : vector<8x128xf32>
    %150 = tpu.matmul %149, %4, %cst_40 {dimension_numbers = #tpu.dot_dimension_numbers<[1], [0], [0], [1], [0, 0, 1, 1], [], []>} : vector<8x16xf32>, vector<16x128xf32>, vector<8x128xf32> -> vector<8x128xf32>
    %151 = arith.index_cast %c1_i32 : i32 to index
    %c0_41 = arith.constant 0 : index
    %c0_42 = arith.constant 0 : index
    %c0_43 = arith.constant 0 : index
    %152 = vector.load %arg5[%151, %c0_41, %c0_42, %c0_43] : memref<2x4x8x128xf32, #tpu.memory_space<vmem>>, vector<1x4x8x128xf32>
    %153 = vector.shape_cast %152 : vector<1x4x8x128xf32> to vector<4x8x128xf32>
    %154 = vector.extract_strided_slice %153 {offsets = [0, 0, 0], sizes = [1, 8, 128], strides = [1, 1, 1]} : vector<4x8x128xf32> to vector<1x8x128xf32>
    %155 = vector.shape_cast %154 : vector<1x8x128xf32> to vector<8x128xf32>
    %156 = vector.extract_strided_slice %153 {offsets = [1, 0, 0], sizes = [1, 8, 128], strides = [1, 1, 1]} : vector<4x8x128xf32> to vector<1x8x128xf32>
    %157 = vector.shape_cast %156 : vector<1x8x128xf32> to vector<8x128xf32>
    %158 = vector.extract_strided_slice %153 {offsets = [2, 0, 0], sizes = [1, 8, 128], strides = [1, 1, 1]} : vector<4x8x128xf32> to vector<1x8x128xf32>
    %159 = vector.shape_cast %158 : vector<1x8x128xf32> to vector<8x128xf32>
    %160 = vector.extract_strided_slice %153 {offsets = [3, 0, 0], sizes = [1, 8, 128], strides = [1, 1, 1]} : vector<4x8x128xf32> to vector<1x8x128xf32>
    %161 = vector.shape_cast %160 : vector<1x8x128xf32> to vector<8x128xf32>
    %162 = arith.subf %161, %155 : vector<8x128xf32>
    %cst_44 = arith.constant 3.000000e+00 : f32
    %163 = vector.broadcast %cst_44 : f32 to vector<8x128xf32>
    %164 = arith.mulf %163, %162 : vector<8x128xf32>
    %165 = arith.subf %159, %157 : vector<8x128xf32>
    %166 = arith.addf %164, %165 : vector<8x128xf32>
    %167 = arith.addf %161, %155 : vector<8x128xf32>
    %cst_45 = arith.constant 9.000000e+00 : f32
    %168 = vector.broadcast %cst_45 : f32 to vector<8x128xf32>
    %169 = arith.mulf %168, %167 : vector<8x128xf32>
    %170 = arith.addf %159, %157 : vector<8x128xf32>
    %171 = arith.addf %169, %170 : vector<8x128xf32>
    %172 = arith.mulf %145, %166 : vector<8x128xf32>
    %173 = arith.mulf %166, %166 : vector<8x128xf32>
    %174 = arith.subf %171, %173 : vector<8x128xf32>
    %175 = arith.mulf %146, %174 : vector<8x128xf32>
    %176 = tpu.concatenate %172, %175 in 0 : vector<8x128xf32>, vector<8x128xf32> -> vector<16x128xf32>
    %cst_46 = arith.constant dense<0.000000e+00> : vector<16x128xf32>
    %177 = tpu.matmul %176, %3, %cst_46 {dimension_numbers = #tpu.dot_dimension_numbers<[1], [0], [0], [1], [0, 0, 1, 1], [], []>} : vector<16x128xf32>, vector<128x128xf32>, vector<16x128xf32> -> vector<16x128xf32>
    %178 = vector.extract_strided_slice %177 {offsets = [0, 0], sizes = [8, 128], strides = [1, 1]} : vector<16x128xf32> to vector<8x128xf32>
    %179 = arith.subf %178, %172 : vector<8x128xf32>
    %180 = vector.extract_strided_slice %177 {offsets = [8, 0], sizes = [8, 128], strides = [1, 1]} : vector<16x128xf32> to vector<8x128xf32>
    %181 = arith.subf %180, %175 : vector<8x128xf32>
    %182 = vector.broadcast %0 : f32 to vector<8x128xf32>
    %183 = arith.addf %181, %182 : vector<8x128xf32>
    %cst_47 = arith.constant 1.000000e-25 : f32
    %184 = vector.broadcast %cst_47 : f32 to vector<8x128xf32>
    %185 = arith.maximumf %183, %184 : vector<8x128xf32>
    %186 = tpu.reciprocal %185 {approx = true} : vector<8x128xf32> -> vector<8x128xf32>
    %187 = arith.mulf %185, %186 : vector<8x128xf32>
    %cst_48 = arith.constant 2.000000e+00 : f32
    %188 = vector.broadcast %cst_48 : f32 to vector<8x128xf32>
    %189 = arith.subf %188, %187 : vector<8x128xf32>
    %190 = arith.mulf %186, %189 : vector<8x128xf32>
    %191 = arith.subf %150, %179 : vector<8x128xf32>
    %192 = arith.mulf %145, %191 : vector<8x128xf32>
    %193 = arith.mulf %192, %190 : vector<8x128xf32>
    %cst_49 = arith.constant 4.000000e+00 : f32
    %194 = vector.broadcast %cst_49 : f32 to vector<8x128xf32>
    %195 = arith.mulf %194, %146 : vector<8x128xf32>
    %196 = arith.mulf %195, %190 : vector<8x128xf32>
    %cst_50 = arith.constant dense<0.000000e+00> : vector<128xf32>
    %197 = vector.multi_reduction <add>, %193, %cst_50 [0] : vector<8x128xf32> to vector<128xf32>
    %198 = vector.shape_cast %197 : vector<128xf32> to vector<1x128xf32>
    %cst_51 = arith.constant dense<0.000000e+00> : vector<128xf32>
    %199 = vector.multi_reduction <add>, %196, %cst_51 [0] : vector<8x128xf32> to vector<128xf32>
    %200 = vector.shape_cast %199 : vector<128xf32> to vector<1x128xf32>
    %201 = vector.broadcast %198 : vector<1x128xf32> to vector<8x128xf32>
    %202 = arith.subf %201, %193 : vector<8x128xf32>
    %203 = vector.broadcast %200 : vector<1x128xf32> to vector<8x128xf32>
    %204 = arith.subf %203, %196 : vector<8x128xf32>
    %cst_52 = arith.constant 2.000000e+00 : f32
    %205 = vector.broadcast %cst_52 : f32 to vector<8x128xf32>
    %206 = arith.mulf %205, %202 : vector<8x128xf32>
    %207 = arith.addf %206, %204 : vector<8x128xf32>
    %cst_53 = arith.constant 4.000000e+00 : f32
    %208 = vector.broadcast %cst_53 : f32 to vector<8x128xf32>
    %209 = arith.mulf %208, %202 : vector<8x128xf32>
    %210 = arith.addf %209, %204 : vector<8x128xf32>
    %cst_54 = arith.constant 6.000000e+00 : f32
    %211 = vector.broadcast %cst_54 : f32 to vector<8x128xf32>
    %212 = arith.mulf %211, %202 : vector<8x128xf32>
    %213 = arith.maximumf %207, %210 : vector<8x128xf32>
    %cst_55 = arith.constant 0.000000e+00 : f32
    %214 = vector.broadcast %cst_55 : f32 to vector<8x128xf32>
    %215 = arith.maximumf %212, %214 : vector<8x128xf32>
    %216 = arith.maximumf %213, %215 : vector<8x128xf32>
    %cst_56 = arith.constant 0.000000e+00 : f32
    %217 = vector.broadcast %cst_56 : f32 to vector<8x128xf32>
    %218 = arith.subf %217, %216 : vector<8x128xf32>
    %219 = math.exp %218 : vector<8x128xf32>
    %220 = arith.subf %207, %216 : vector<8x128xf32>
    %221 = math.exp %220 : vector<8x128xf32>
    %222 = arith.subf %210, %216 : vector<8x128xf32>
    %223 = math.exp %222 : vector<8x128xf32>
    %224 = arith.subf %212, %216 : vector<8x128xf32>
    %225 = math.exp %224 : vector<8x128xf32>
    %226 = arith.addf %219, %221 : vector<8x128xf32>
    %227 = arith.addf %226, %223 : vector<8x128xf32>
    %228 = arith.addf %227, %225 : vector<8x128xf32>
    %229 = tpu.reciprocal %228 {approx = true} : vector<8x128xf32> -> vector<8x128xf32>
    %230 = arith.mulf %228, %229 : vector<8x128xf32>
    %cst_57 = arith.constant 2.000000e+00 : f32
    %231 = vector.broadcast %cst_57 : f32 to vector<8x128xf32>
    %232 = arith.subf %231, %230 : vector<8x128xf32>
    %233 = arith.mulf %229, %232 : vector<8x128xf32>
    %234 = arith.mulf %219, %233 : vector<8x128xf32>
    %235 = vector.broadcast %2 : f32 to vector<8x128xf32>
    %236 = arith.mulf %235, %234 : vector<8x128xf32>
    %237 = vector.broadcast %1 : f32 to vector<8x128xf32>
    %238 = arith.mulf %237, %155 : vector<8x128xf32>
    %239 = arith.addf %236, %238 : vector<8x128xf32>
    %240 = arith.mulf %221, %233 : vector<8x128xf32>
    %241 = vector.broadcast %2 : f32 to vector<8x128xf32>
    %242 = arith.mulf %241, %240 : vector<8x128xf32>
    %243 = vector.broadcast %1 : f32 to vector<8x128xf32>
    %244 = arith.mulf %243, %157 : vector<8x128xf32>
    %245 = arith.addf %242, %244 : vector<8x128xf32>
    %246 = arith.mulf %223, %233 : vector<8x128xf32>
    %247 = vector.broadcast %2 : f32 to vector<8x128xf32>
    %248 = arith.mulf %247, %246 : vector<8x128xf32>
    %249 = vector.broadcast %1 : f32 to vector<8x128xf32>
    %250 = arith.mulf %249, %159 : vector<8x128xf32>
    %251 = arith.addf %248, %250 : vector<8x128xf32>
    %252 = arith.mulf %225, %233 : vector<8x128xf32>
    %253 = vector.broadcast %2 : f32 to vector<8x128xf32>
    %254 = arith.mulf %253, %252 : vector<8x128xf32>
    %255 = vector.broadcast %1 : f32 to vector<8x128xf32>
    %256 = arith.mulf %255, %161 : vector<8x128xf32>
    %257 = arith.addf %254, %256 : vector<8x128xf32>
    %258 = vector.shape_cast %239 : vector<8x128xf32> to vector<1x8x128xf32>
    %259 = vector.shape_cast %245 : vector<8x128xf32> to vector<1x8x128xf32>
    %260 = vector.shape_cast %251 : vector<8x128xf32> to vector<1x8x128xf32>
    %261 = vector.shape_cast %257 : vector<8x128xf32> to vector<1x8x128xf32>
    %262 = tpu.concatenate %258, %259, %260, %261 in 0 : vector<1x8x128xf32>, vector<1x8x128xf32>, vector<1x8x128xf32>, vector<1x8x128xf32> -> vector<4x8x128xf32>
    %263 = arith.index_cast %c1_i32 : i32 to index
    %c0_58 = arith.constant 0 : index
    %c0_59 = arith.constant 0 : index
    %c0_60 = arith.constant 0 : index
    %264 = vector.load %arg8[%263, %c0_58, %c0_59, %c0_60] : memref<2x4x8x128xf32, #tpu.memory_space<vmem>>, vector<1x4x8x128xf32>
    %265 = vector.shape_cast %264 : vector<1x4x8x128xf32> to vector<4x8x128xf32>
    %266 = vector.shape_cast %262 : vector<4x8x128xf32> to vector<1x4x8x128xf32>
    tpu.vector_store %arg8[%263, %c0_58, %c0_59, %c0_60], %266 {strides = array<i32>} : memref<2x4x8x128xf32, #tpu.memory_space<vmem>>, vector<1x4x8x128xf32>,
    %cst_61 = arith.constant 0.000000e+00 : f32
    %267 = vector.broadcast %cst_61 : f32 to vector<1x128xf32>
    %cst_62 = arith.constant 2.000000e+00 : f32
    %268 = vector.broadcast %cst_62 : f32 to vector<1x128xf32>
    %269 = arith.mulf %268, %198 : vector<1x128xf32>
    %270 = arith.addf %269, %200 : vector<1x128xf32>
    %cst_63 = arith.constant 4.000000e+00 : f32
    %271 = vector.broadcast %cst_63 : f32 to vector<1x128xf32>
    %272 = arith.mulf %271, %198 : vector<1x128xf32>
    %273 = arith.addf %272, %200 : vector<1x128xf32>
    %cst_64 = arith.constant 6.000000e+00 : f32
    %274 = vector.broadcast %cst_64 : f32 to vector<1x128xf32>
    %275 = arith.mulf %274, %198 : vector<1x128xf32>
    %276 = tpu.concatenate %267, %270, %273, %275 in 0 : vector<1x128xf32>, vector<1x128xf32>, vector<1x128xf32>, vector<1x128xf32> -> vector<4x128xf32>
    %277 = arith.index_cast %c1_i32 : i32 to index
    %c0_65 = arith.constant 0 : index
    %c0_66 = arith.constant 0 : index
    %278 = vector.load %arg9[%277, %c0_65, %c0_66] : memref<2x4x128xf32, #tpu.memory_space<vmem>>, vector<1x4x128xf32>
    %279 = vector.shape_cast %278 : vector<1x4x128xf32> to vector<4x128xf32>
    %280 = vector.shape_cast %276 : vector<4x128xf32> to vector<1x4x128xf32>
    tpu.vector_store %arg9[%277, %c0_65, %c0_66], %280 {strides = array<i32>} : memref<2x4x128xf32, #tpu.memory_space<vmem>>, vector<1x4x128xf32>,
    %c2_i32 = arith.constant 2 : i32
    return
  }
  func.func @transform_0(%arg0: i32) -> i32 {
    %c0_i32 = arith.constant 0 : i32
    %c0_i32_0 = arith.constant 0 : i32
    return %c0_i32 : i32
  }
  func.func @transform_1(%arg0: i32) -> i32 {
    %c0_i32 = arith.constant 0 : i32
    %c0_i32_0 = arith.constant 0 : i32
    return %c0_i32 : i32
  }
  func.func @transform_2(%arg0: i32) -> (i32, i32, i32) {
    %c0_i32 = arith.constant 0 : i32
    %c0_i32_0 = arith.constant 0 : i32
    %c0_i32_1 = arith.constant 0 : i32
    return %arg0, %c0_i32, %c0_i32_0 : i32, i32, i32
  }
  func.func @transform_3(%arg0: i32) -> (i32, i32, i32) {
    %c0_i32 = arith.constant 0 : i32
    %c0_i32_0 = arith.constant 0 : i32
    %c0_i32_1 = arith.constant 0 : i32
    return %arg0, %c0_i32, %c0_i32_0 : i32, i32, i32
  }
  func.func @transform_4(%arg0: i32) -> (i32, i32, i32, i32) {
    %c0_i32 = arith.constant 0 : i32
    %c0_i32_0 = arith.constant 0 : i32
    %c0_i32_1 = arith.constant 0 : i32
    %c0_i32_2 = arith.constant 0 : i32
    return %arg0, %c0_i32, %c0_i32_0, %c0_i32_1 : i32, i32, i32, i32
  }
  func.func @transform_5(%arg0: i32) -> (i32, i32) {
    %c0_i32 = arith.constant 0 : i32
    %c0_i32_0 = arith.constant 0 : i32
    %c0_i32_1 = arith.constant 0 : i32
    return %c0_i32, %c0_i32_0 : i32, i32
  }
  func.func @transform_6(%arg0: i32) -> (i32, i32) {
    %c0_i32 = arith.constant 0 : i32
    %c0_i32_0 = arith.constant 0 : i32
    %c0_i32_1 = arith.constant 0 : i32
    return %c0_i32, %c0_i32_0 : i32, i32
  }
  func.func @transform_7(%arg0: i32) -> (i32, i32, i32, i32) {
    %c0_i32 = arith.constant 0 : i32
    %c0_i32_0 = arith.constant 0 : i32
    %c0_i32_1 = arith.constant 0 : i32
    %c0_i32_2 = arith.constant 0 : i32
    return %arg0, %c0_i32, %c0_i32_0, %c0_i32_1 : i32, i32, i32, i32
  }
  func.func @transform_8(%arg0: i32) -> (i32, i32, i32) {
    %c0_i32 = arith.constant 0 : i32
    %c0_i32_0 = arith.constant 0 : i32
    %c0_i32_1 = arith.constant 0 : i32
    return %arg0, %c0_i32, %c0_i32_0 : i32, i32, i32
  }
}

</mosaic_0001>

<llo_original>
// kernel: dbp_layer.1
$region0: #{dbp_layer.1}
  #allocation0 [shape = 'u32[]', space=smem, size = 0x4, offset = 0x4, fixed_abs, tag = 'smem constant byte address 0x4 - core index']
  #allocation1 [shape = 'u32[144,128]{1,0:T(1,128)}', space=vmem, size = 0x12000, scoped, tag = 'internal scratch']
  #allocation2 [shape = 'f32[1]{0:T(128)S(6)}', space=smem, size = 0x200, scoped, tag = 'scoped memory for dbp_layer.1']
  #allocation3 [shape = 'f32[1]{0:T(128)S(6)}', space=smem, size = 0x200, scoped, tag = 'scoped memory for dbp_layer.1']
  %s0 = inlined_call_operand.<no memory space> [shape: f32[1], index: 0, kind: input, shape index: {}]
  %s1 = inlined_call_operand.<no memory space> [shape: f32[1], index: 1, kind: input, shape index: {}]
  %s2 = inlined_call_operand.vmem [shape: f32[4,8,16], index: 2, kind: input, shape index: {}]
  %s3 = inlined_call_operand.vmem [shape: f32[4,8,128], index: 3, kind: input, shape index: {}]
  %s4 = inlined_call_operand.vmem [shape: f32[4,4,8,128], index: 4, kind: input, shape index: {}]
  %s5 = inlined_call_operand.vmem [shape: f32[128,128], index: 5, kind: input, shape index: {}]
  %s6 = inlined_call_operand.vmem [shape: f32[16,128], index: 6, kind: input, shape index: {}]
  %s7 = inlined_call_operand.vmem [shape: f32[4,4,8,128], index: 7, kind: output, shape index: {0}]
  %s8 = inlined_call_operand.vmem [shape: f32[4,4,128], index: 8, kind: output, shape index: {1}]
  %9 = xla_tuple %s7, %s8
  %s10 = sld [smem:[#allocation0]]
  $region69: #{dbp_layer.1} parent=0
    _
  %s12 = ssub.s32 1, %s10
  %s13 = scalar_select 0, %s12, %s10
  %14 = sst [smem:[#allocation2]] %s0
  %15 = sst [smem:[#allocation3]] %s1
  loop: start=0, step=1, limit=4
  $region2: #{dbp_layer.1} parent=0 // loop_pre_header
    _
  $region3: #{dbp_layer.1} parent=0 // loop_header
    %s17 = sphi 0, %s21
    %p18 = scmp.ge.s32.totalorder %s17, 4
    %s25 = sphi 0, %s25
    %s27 = sphi 0, %s25
    %s28 = sphi 0, %s27
    %s42 = sphi 0, %s28
    %s46 = sphi 0, %s46
    %s48 = sphi 0, %s46
    %s49 = sphi 0, %s48
    %s63 = sphi 0, %s49
    %s69 = sphi 0, %s71
    %s72 = sphi 0, %s69
    %s73 = sphi 0, %s72
    %s89 = sphi 0, %s73
    %s95 = sphi 0, %s97
    %s98 = sphi 0, %s95
    %s99 = sphi 0, %s98
    %s115 = sphi 0, %s99
    %s121 = sphi 0, %s123
    %s124 = sphi 0, %s121
    %s125 = sphi 0, %s124
    %s141 = sphi 0, %s125
    %s145 = sphi 0, %s145
    %s147 = sphi 0, %s145
    %s148 = sphi 0, %s147
    %s162 = sphi 0, %s148
    %s166 = sphi 0, %s166
    %s168 = sphi 0, %s166
    %s169 = sphi 0, %s168
    %s183 = sphi 0, %s169
    %s189 = sphi 0, %s191
    %s192 = sphi 0, %s189
    %s193 = sphi 0, %s192
    %s209 = sphi 0, %s193
    %s215 = sphi 0, %s217
    %s218 = sphi 0, %s215
    %s219 = sphi 0, %s218
    %s235 = sphi 0, %s219
  $region4: #{dbp_layer.1} parent=0 // loop_header_branch
    %20 = sbr.rel (%p18) target = $region8
  $region5: #{dbp_layer.1} parent=0 // loop_body
    %s22 = ssub.s32 %s17, 1
    %s23 = ssub.s32 %s17, 2
    %s24 = sadd.s32 %s17, 1
    %s26 = sadd.s32 %s25, 1
    %p29 = scmp.eq.s32.totalorder %s17, 1
    %p30 = scmp.ne.s32.totalorder %s25, %s27
    %p31 = scmp.eq.s32.totalorder %s17, 0
    %p32 = por %p30, %p31
    %p33 = scmp.ne.s32.totalorder %s25, %s27
    %p34 = scmp.eq.s32.totalorder %s22, 1
    %p35 = por %p33, %p34
    %p36 = scmp.ne.s32.totalorder %s27, %s28
    %p37 = scmp.eq.s32.totalorder %s22, 0
    %p38 = por %p36, %p37
    %p39 = scmp.ne.s32.totalorder %s27, %s28
    %p40 = scmp.eq.s32.totalorder %s23, 1
    %p41 = por %p39, %p40
    %p43 = scmp.ne.s32.totalorder %s28, %s42
    %p44 = scmp.eq.s32.totalorder %s23, 0
    %p45 = por %p43, %p44
    %s47 = sadd.s32 %s46, 1
    %p50 = scmp.eq.s32.totalorder %s17, 1
    %p51 = scmp.ne.s32.totalorder %s46, %s48
    %p52 = scmp.eq.s32.totalorder %s17, 0
    %p53 = por %p51, %p52
    %p54 = scmp.ne.s32.totalorder %s46, %s48
    %p55 = scmp.eq.s32.totalorder %s22, 1
    %p56 = por %p54, %p55
    %p57 = scmp.ne.s32.totalorder %s48, %s49
    %p58 = scmp.eq.s32.totalorder %s22, 0
    %p59 = por %p57, %p58
    %p60 = scmp.ne.s32.totalorder %s48, %s49
    %p61 = scmp.eq.s32.totalorder %s23, 1
    %p62 = por %p60, %p61
    %p64 = scmp.ne.s32.totalorder %s49, %s63
    %p65 = scmp.eq.s32.totalorder %s23, 0
    %p66 = por %p64, %p65
    %s67 = ssub.s32 %s17, %s24
    %p68 = scmp.eq.s32.totalorder %s67, 0
    %s70 = sadd.s32 %s69, 1
    %s71 = scalar_select %p68, %s69, %s70
    %p74 = pneg %p68
    %p75 = scmp.eq.s32.totalorder %s17, 1
    %p76 = por %p74, %p75
    %p77 = scmp.ne.s32.totalorder %s69, %s72
    %p78 = scmp.eq.s32.totalorder %s17, 0
    %p79 = por %p77, %p78
    %p80 = scmp.ne.s32.totalorder %s69, %s72
    %p81 = scmp.eq.s32.totalorder %s22, 1
    %p82 = por %p80, %p81
    %p83 = scmp.ne.s32.totalorder %s72, %s73
    %p84 = scmp.eq.s32.totalorder %s22, 0
    %p85 = por %p83, %p84
    %p86 = scmp.ne.s32.totalorder %s72, %s73
    %p87 = scmp.eq.s32.totalorder %s23, 1
    %p88 = por %p86, %p87
    %p90 = scmp.ne.s32.totalorder %s73, %s89
    %p91 = scmp.eq.s32.totalorder %s23, 0
    %p92 = por %p90, %p91
    %s93 = ssub.s32 %s17, %s24
    %p94 = scmp.eq.s32.totalorder %s93, 0
    %s96 = sadd.s32 %s95, 1
    %s97 = scalar_select %p94, %s95, %s96
    %p100 = pneg %p94
    %p101 = scmp.eq.s32.totalorder %s17, 1
    %p102 = por %p100, %p101
    %p103 = scmp.ne.s32.totalorder %s95, %s98
    %p104 = scmp.eq.s32.totalorder %s17, 0
    %p105 = por %p103, %p104
    %p106 = scmp.ne.s32.totalorder %s95, %s98
    %p107 = scmp.eq.s32.totalorder %s22, 1
    %p108 = por %p106, %p107
    %p109 = scmp.ne.s32.totalorder %s98, %s99
    %p110 = scmp.eq.s32.totalorder %s22, 0
    %p111 = por %p109, %p110
    %p112 = scmp.ne.s32.totalorder %s98, %s99
    %p113 = scmp.eq.s32.totalorder %s23, 1
    %p114 = por %p112, %p113
    %p116 = scmp.ne.s32.totalorder %s99, %s115
    %p117 = scmp.eq.s32.totalorder %s23, 0
    %p118 = por %p116, %p117
    %s119 = ssub.s32 %s17, %s24
    %p120 = scmp.eq.s32.totalorder %s119, 0
    %s122 = sadd.s32 %s121, 1
    %s123 = scalar_select %p120, %s121, %s122
    %p126 = pneg %p120
    %p127 = scmp.eq.s32.totalorder %s17, 1
    %p128 = por %p126, %p127
    %p129 = scmp.ne.s32.totalorder %s121, %s124
    %p130 = scmp.eq.s32.totalorder %s17, 0
    %p131 = por %p129, %p130
    %p132 = scmp.ne.s32.totalorder %s121, %s124
    %p133 = scmp.eq.s32.totalorder %s22, 1
    %p134 = por %p132, %p133
    %p135 = scmp.ne.s32.totalorder %s124, %s125
    %p136 = scmp.eq.s32.totalorder %s22, 0
    %p137 = por %p135, %p136
    %p138 = scmp.ne.s32.totalorder %s124, %s125
    %p139 = scmp.eq.s32.totalorder %s23, 1
    %p140 = por %p138, %p139
    %p142 = scmp.ne.s32.totalorder %s125, %s141
    %p143 = scmp.eq.s32.totalorder %s23, 0
    %p144 = por %p142, %p143
    %s146 = sadd.s32 %s145, 1
    %p149 = scmp.eq.s32.totalorder %s17, 1
    %p150 = scmp.ne.s32.totalorder %s145, %s147
    %p151 = scmp.eq.s32.totalorder %s17, 0
    %p152 = por %p150, %p151
    %p153 = scmp.ne.s32.totalorder %s145, %s147
    %p154 = scmp.eq.s32.totalorder %s22, 1
    %p155 = por %p153, %p154
    %p156 = scmp.ne.s32.totalorder %s147, %s148
    %p157 = scmp.eq.s32.totalorder %s22, 0
    %p158 = por %p156, %p157
    %p159 = scmp.ne.s32.totalorder %s147, %s148
    %p160 = scmp.eq.s32.totalorder %s23, 1
    %p161 = por %p159, %p160
    %p163 = scmp.ne.s32.totalorder %s148, %s162
    %p164 = scmp.eq.s32.totalorder %s23, 0
    %p165 = por %p163, %p164
    %s167 = sadd.s32 %s166, 1
    %p170 = scmp.eq.s32.totalorder %s17, 1
    %p171 = scmp.ne.s32.totalorder %s166, %s168
    %p172 = scmp.eq.s32.totalorder %s17, 0
    %p173 = por %p171, %p172
    %p174 = scmp.ne.s32.totalorder %s166, %s168
    %p175 = scmp.eq.s32.totalorder %s22, 1
    %p176 = por %p174, %p175
    %p177 = scmp.ne.s32.totalorder %s168, %s169
    %p178 = scmp.eq.s32.totalorder %s22, 0
    %p179 = por %p177, %p178
    %p180 = scmp.ne.s32.totalorder %s168, %s169
    %p181 = scmp.eq.s32.totalorder %s23, 1
    %p182 = por %p180, %p181
    %p184 = scmp.ne.s32.totalorder %s169, %s183
    %p185 = scmp.eq.s32.totalorder %s23, 0
    %p186 = por %p184, %p185
    %s187 = ssub.s32 %s17, %s24
    %p188 = scmp.eq.s32.totalorder %s187, 0
    %s190 = sadd.s32 %s189, 1
    %s191 = scalar_select %p188, %s189, %s190
    %p194 = pneg %p188
    %p195 = scmp.eq.s32.totalorder %s17, 1
    %p196 = por %p194, %p195
    %p197 = scmp.ne.s32.totalorder %s189, %s192
    %p198 = scmp.eq.s32.totalorder %s17, 0
    %p199 = por %p197, %p198
    %p200 = scmp.ne.s32.totalorder %s189, %s192
    %p201 = scmp.eq.s32.totalorder %s22, 1
    %p202 = por %p200, %p201
    %p203 = scmp.ne.s32.totalorder %s192, %s193
    %p204 = scmp.eq.s32.totalorder %s22, 0
    %p205 = por %p203, %p204
    %p206 = scmp.ne.s32.totalorder %s192, %s193
    %p207 = scmp.eq.s32.totalorder %s23, 1
    %p208 = por %p206, %p207
    %p210 = scmp.ne.s32.totalorder %s193, %s209
    %p211 = scmp.eq.s32.totalorder %s23, 0
    %p212 = por %p210, %p211
    %s213 = ssub.s32 %s17, %s24
    %p214 = scmp.eq.s32.totalorder %s213, 0
    %s216 = sadd.s32 %s215, 1
    %s217 = scalar_select %p214, %s215, %s216
    %p220 = pneg %p214
    %p221 = scmp.eq.s32.totalorder %s17, 1
    %p222 = por %p220, %p221
    %p223 = scmp.ne.s32.totalorder %s215, %s218
    %p224 = scmp.eq.s32.totalorder %s17, 0
    %p225 = por %p223, %p224
    %p226 = scmp.ne.s32.totalorder %s215, %s218
    %p227 = scmp.eq.s32.totalorder %s22, 1
    %p228 = por %p226, %p227
    %p229 = scmp.ne.s32.totalorder %s218, %s219
    %p230 = scmp.eq.s32.totalorder %s22, 0
    %p231 = por %p229, %p230
    %p232 = scmp.ne.s32.totalorder %s218, %s219
    %p233 = scmp.eq.s32.totalorder %s23, 1
    %p234 = por %p232, %p233
    %p236 = scmp.ne.s32.totalorder %s219, %s235
    %p237 = scmp.eq.s32.totalorder %s23, 0
    %p238 = por %p236, %p237
    %p239 = scmp.le.s32.totalorder 1, %s17
    %p240 = scmp.lt.s32.totalorder %s17, 3
    %p241 = pnand %p239, %p240
    %p242 = pneg %p241
    // Predicated region
    $region9: #{dbp_layer.1} parent=5 // pred_check
      _
    $region10: #{dbp_layer.1} parent=5 // pred_check_branch
      %244 = sbr.rel (%p241) target = $region12
    $region11: #{dbp_layer.1} parent=5 // pred_region
      %s245 = ssub.s32 %s17, 1
      // Predicated region
      $region13: #{dbp_layer.1} parent=11 // pred_check
        %p246 = pneg %p38
      $region14: #{dbp_layer.1} parent=11 // pred_check_branch
        %248 = sbr.rel (%p246) target = $region16
      $region15: #{dbp_layer.1} parent=11 // pred_region
        _
      $region16: #{dbp_layer.1} parent=11 // pred_fallthru
        _
      // Predicated region
      $region17: #{dbp_layer.1} parent=11 // pred_check
        %p249 = pneg %p59
      $region18: #{dbp_layer.1} parent=11 // pred_check_branch
        %251 = sbr.rel (%p249) target = $region20
      $region19: #{dbp_layer.1} parent=11 // pred_region
        _
      $region20: #{dbp_layer.1} parent=11 // pred_fallthru
        _
      // Predicated region
      $region21: #{dbp_layer.1} parent=11 // pred_check
        %p252 = pneg %p158
      $region22: #{dbp_layer.1} parent=11 // pred_check_branch
        %254 = sbr.rel (%p252) target = $region24
      $region23: #{dbp_layer.1} parent=11 // pred_region
        _
      $region24: #{dbp_layer.1} parent=11 // pred_fallthru
        _
      // Predicated region
      $region25: #{dbp_layer.1} parent=11 // pred_check
        %p255 = pneg %p179
      $region26: #{dbp_layer.1} parent=11 // pred_check_branch
        %257 = sbr.rel (%p255) target = $region28
      $region27: #{dbp_layer.1} parent=11 // pred_region
        _
      $region28: #{dbp_layer.1} parent=11 // pred_fallthru
        _
    $region12: #{dbp_layer.1} parent=5 // pred_fallthru
      _
    %p258 = scmp.lt.s32.totalorder %s17, 2
    // Predicated region
    $region29: #{dbp_layer.1} parent=5 // pred_check
      %p259 = pneg %p258
    $region30: #{dbp_layer.1} parent=5 // pred_check_branch
      %261 = sbr.rel (%p259) target = $region32
    $region31: #{dbp_layer.1} parent=5 // pred_region
      // Predicated region
      $region33: #{dbp_layer.1} parent=31 // pred_check
        %p262 = pneg %p79
      $region34: #{dbp_layer.1} parent=31 // pred_check_branch
        %264 = sbr.rel (%p262) target = $region36
      $region35: #{dbp_layer.1} parent=31 // pred_region
        %s265 = smul.u32 2, %s17
        %p266 = scmp.lt.s32.totalorder %s265, 3
        %s267 = scalar_select %p266, %s265, 3
        %s268 = smul.addr %s267, 8
        %s269 = scalar_lea.vmem %s2, %s268
        %s270 = smul.u32 2, %s17
      $region36: #{dbp_layer.1} parent=31 // pred_fallthru
        _
      // Predicated region
      $region37: #{dbp_layer.1} parent=31 // pred_check
        %p271 = pneg %p105
      $region38: #{dbp_layer.1} parent=31 // pred_check_branch
        %273 = sbr.rel (%p271) target = $region40
      $region39: #{dbp_layer.1} parent=31 // pred_region
        %s274 = smul.u32 2, %s17
        %p275 = scmp.lt.s32.totalorder %s274, 3
        %s276 = scalar_select %p275, %s274, 3
        %s277 = smul.addr %s276, 8
        %s278 = scalar_lea.vmem %s3, %s277
        %s279 = smul.u32 2, %s17
      $region40: #{dbp_layer.1} parent=31 // pred_fallthru
        _
      // Predicated region
      $region41: #{dbp_layer.1} parent=31 // pred_check
        %p280 = pneg %p131
      $region42: #{dbp_layer.1} parent=31 // pred_check_branch
        %282 = sbr.rel (%p280) target = $region44
      $region43: #{dbp_layer.1} parent=31 // pred_region
        %s283 = smul.u32 2, %s17
        %p284 = scmp.lt.s32.totalorder %s283, 3
        %s285 = scalar_select %p284, %s283, 3
        %s286 = smul.addr %s285, 4
        %s287 = smul.addr %s286, 8
        %s288 = scalar_lea.vmem %s4, %s287
        %s289 = smul.u32 2, %s17
      $region44: #{dbp_layer.1} parent=31 // pred_fallthru
        _
    $region32: #{dbp_layer.1} parent=5 // pred_fallthru
      _
    %p290 = scmp.le.s32.totalorder 1, %s17
    %p291 = scmp.lt.s32.totalorder %s17, 3
    %p292 = pnand %p290, %p291
    %p293 = pneg %p292
    // Predicated region
    $region45: #{dbp_layer.1} parent=5 // pred_check
      _
    $region46: #{dbp_layer.1} parent=5 // pred_check_branch
      %295 = sbr.rel (%p292) target = $region48
    $region47: #{dbp_layer.1} parent=5 // pred_region
      %s296 = ssub.s32 %s17, 1
      %p297 = pneg %p38
      %p298 = pneg %p35
      %p299 = pneg %p59
      %p300 = pneg %p56
      %s301 = smul.u32 2, %s22
      %p302 = scmp.lt.s32.totalorder %s301, 3
      %s303 = scalar_select %p302, %s301, 3
      %s304 = smul.addr %s303, 8
      %s305 = scalar_lea.vmem %s2, %s304
      %p306 = pneg %p85
      %p307 = pneg %p82
      %s308 = smul.u32 2, %s22
      %p309 = scmp.lt.s32.totalorder %s308, 3
      %s310 = scalar_select %p309, %s308, 3
      %s311 = smul.addr %s310, 8
      %s312 = scalar_lea.vmem %s3, %s311
      %p313 = pneg %p111
      %p314 = pneg %p108
      %s315 = smul.u32 2, %s22
      %p316 = scmp.lt.s32.totalorder %s315, 3
      %s317 = scalar_select %p316, %s315, 3
      %s318 = smul.addr %s317, 4
      %s319 = smul.addr %s318, 8
      %s320 = scalar_lea.vmem %s4, %s319
      %p321 = pneg %p137
      %p322 = pneg %p134
      %p323 = pneg %p158
      %p324 = pneg %p155
      %p325 = pneg %p179
      %p326 = pneg %p176
      %p327 = pneg %p205
      %p328 = pneg %p202
      %s329 = smul.u32 2, %s22
      %p330 = scmp.lt.s32.totalorder %s329, 3
      %s331 = scalar_select %p330, %s329, 3
      %s332 = smul.addr %s331, 4
      %s333 = smul.addr %s332, 8
      %s334 = scalar_lea.vmem %s7, %s333
      %p335 = pneg %p231
      %p336 = pneg %p228
      %s337 = smul.u32 2, %s22
      %p338 = scmp.lt.s32.totalorder %s337, 3
      %s339 = scalar_select %p338, %s337, 3
      %s340 = smul.addr %s339, 4
      %s341 = scalar_lea.vmem %s8, %s340
      %s342 = smul.u32 2, %s22
      %p343 = scmp.lt.s32.totalorder %s342, 3
      %s344 = scalar_select %p343, %s342, 3
      %s345 = smul.addr %s344, 8
      %s346 = scalar_lea.vmem %s2, %s345
      %s347 = smul.u32 2, %s22
      %s348 = smul.u32 2, %s22
      %p349 = scmp.lt.s32.totalorder %s348, 3
      %s350 = scalar_select %p349, %s348, 3
      %s351 = smul.addr %s350, 8
      %s352 = scalar_lea.vmem %s3, %s351
      %s353 = smul.u32 2, %s22
      %s354 = smul.u32 2, %s22
      %p355 = scmp.lt.s32.totalorder %s354, 3
      %s356 = scalar_select %p355, %s354, 3
      %s357 = smul.addr %s356, 4
      %s358 = smul.addr %s357, 8
      %s359 = scalar_lea.vmem %s4, %s358
      %s360 = smul.u32 2, %s22
      %s361 = smul.u32 2, %s22
      %p362 = scmp.lt.s32.totalorder %s361, 3
      %s363 = scalar_select %p362, %s361, 3
      %s364 = smul.addr %s363, 4
      %s365 = smul.addr %s364, 8
      %s366 = scalar_lea.vmem %s7, %s365
      %s367 = smul.u32 2, %s22
      %s368 = smul.u32 2, %s22
      %p369 = scmp.lt.s32.totalorder %s368, 3
      %s370 = scalar_select %p369, %s368, 3
      %s371 = smul.addr %s370, 4
      %s372 = scalar_lea.vmem %s8, %s371
      %s373 = smul.u32 2, %s22
      %s374 = sld [smem:[#allocation2]]
      %s375 = sld [smem:[#allocation3]]
      %s376 = ssub.f32 1.0, %s375
      %v377 = vld [vmem:[%s5] sm:$0xff]
      %v378 = vld [vmem:[%s5 + $0x8] sm:$0xff]
      %v379 = vld [vmem:[%s5 + $0x10] sm:$0xff]
      %v380 = vld [vmem:[%s5 + $0x18] sm:$0xff]
      %v381 = vld [vmem:[%s5 + $0x20] sm:$0xff]
      %v382 = vld [vmem:[%s5 + $0x28] sm:$0xff]
      %v383 = vld [vmem:[%s5 + $0x30] sm:$0xff]
      %v384 = vld [vmem:[%s5 + $0x38] sm:$0xff]
      %v385 = vld [vmem:[%s5 + $0x40] sm:$0xff]
      %v386 = vld [vmem:[%s5 + $0x48] sm:$0xff]
      %v387 = vld [vmem:[%s5 + $0x50] sm:$0xff]
      %v388 = vld [vmem:[%s5 + $0x58] sm:$0xff]
      %v389 = vld [vmem:[%s5 + $0x60] sm:$0xff]
      %v390 = vld [vmem:[%s5 + $0x68] sm:$0xff]
      %v391 = vld [vmem:[%s5 + $0x70] sm:$0xff]
      %v392 = vld [vmem:[%s5 + $0x78] sm:$0xff]
      %v393 = vld [vmem:[%s6] sm:$0xff]
      %v394 = vld [vmem:[%s6 + $0x8] sm:$0xff]
      %v395 = vld [vmem:[%s352] sm:$0xff]
      %v396 = vmul.f32 %v395, %v395
      %v397 = vld [vmem:[%s346] sm:$0xff]
      %vm398 = vcmask 130048
      %v400 = vsel %vm398, %v397, 0
      %402 = vmatprep.subr.mxu0 0.0
      %403 = vmatpush1.msra.mxu0 0.0
      %404 = vmatprep.subr.mxu0 0.0
      %405 = vmatpush1.msra.mxu0 0.0
      %406 = vmatprep.subr.mxu0 0.0
      %407 = vmatpush1.msra.mxu0 0.0
      %408 = vmatprep.subr.mxu0 0.0
      %409 = vmatpush1.msra.mxu0 0.0
      %410 = vmatprep.subr.mxu0 0.0
      %411 = vmatpush1.msra.mxu0 0.0
      %412 = vmatprep.subr.mxu0 0.0
      %413 = vmatpush1.msra.mxu0 0.0
      %414 = vmatprep.subr.mxu0 0.0
      %415 = vmatpush1.msra.mxu0 0.0
      %416 = vmatprep.subr.mxu0 0.0
      %417 = vmatpush1.msra.mxu0 0.0
      %418 = vmatprep.subr.mxu0 0.0
      %419 = vmatpush1.msra.mxu0 0.0
      %420 = vmatprep.subr.mxu0 0.0
      %421 = vmatpush1.msra.mxu0 0.0
      %422 = vmatprep.subr.mxu0 0.0
      %423 = vmatpush1.msra.mxu0 0.0
      %424 = vmatprep.subr.mxu0 0.0
      %425 = vmatpush1.msra.mxu0 0.0
      %426 = vmatprep.subr.mxu0 0.0
      %427 = vmatpush1.msra.mxu0 0.0
      %428 = vmatprep.subr.mxu0 0.0
      %429 = vmatpush1.msra.mxu0 0.0
      %430 = vmatprep.subr.mxu0 0.0
      %431 = vmatpush1.msra.mxu0 %v394
      %432 = vmatprep.subr.mxu0 0.0
      %433 = vmatpush1.msra.mxu0 %v393
      %434 = vmatprep.subr.mxu0 0.0
      %435 = vmatpush2.msra.mxu0 0.0
      %436 = vmatprep.subr.mxu0 0.0
      %437 = vmatpush2.msra.mxu0 0.0
      %438 = vmatprep.subr.mxu0 0.0
      %439 = vmatpush2.msra.mxu0 0.0
      %440 = vmatprep.subr.mxu0 0.0
      %441 = vmatpush2.msra.mxu0 0.0
      %442 = vmatprep.subr.mxu0 0.0
      %443 = vmatpush2.msra.mxu0 0.0
      %444 = vmatprep.subr.mxu0 0.0
      %445 = vmatpush2.msra.mxu0 0.0
      %446 = vmatprep.subr.mxu0 0.0
      %447 = vmatpush2.msra.mxu0 0.0
      %448 = vmatprep.subr.mxu0 0.0
      %449 = vmatpush2.msra.mxu0 0.0
      %450 = vmatprep.subr.mxu0 0.0
      %451 = vmatpush2.msra.mxu0 0.0
      %452 = vmatprep.subr.mxu0 0.0
      %453 = vmatpush2.msra.mxu0 0.0
      %454 = vmatprep.subr.mxu0 0.0
      %455 = vmatpush2.msra.mxu0 0.0
      %456 = vmatprep.subr.mxu0 0.0
      %457 = vmatpush2.msra.mxu0 0.0
      %458 = vmatprep.subr.mxu0 0.0
      %459 = vmatpush2.msra.mxu0 0.0
      %460 = vmatprep.subr.mxu0 0.0
      %461 = vmatpush2.msra.mxu0 0.0
      %462 = vmatprep.subr.mxu0 0.0
      %463 = vmatpush2.msra.mxu0 0.0
      %464 = vmatprep.subr.mxu0 0.0
      %465 = vmatpush2.msra.mxu0 0.0
      %466 = vmatprep.mubr.f32.mxu0 0.0
      %467 = vmatmul.mubr.f32.gmra.mxu0 %v400
      %v468 = vpop.f32.mrf.mxu0
      %v469 = vadd.f32 0.0, %v468
      %v470 = vpop.f32.mrf.mxu0
      %471 = vdwg.mxu0
      %v472 = vld [vmem:[%s359] sm:$0xff]
      %v473 = vld [vmem:[%s359 + $0x8] sm:$0xff]
      %v474 = vld [vmem:[%s359 + $0x10] sm:$0xff]
      %v475 = vld [vmem:[%s359 + $0x18] sm:$0xff]
      %v476 = vsub.f32 %v475, %v472
      %v477 = vmul.f32 %v476, 3.0
      %v478 = vsub.f32 %v474, %v473
      %v479 = vadd.f32 %v477, %v478
      %v480 = vadd.f32 %v475, %v472
      %v481 = vmul.f32 %v480, 9.0
      %v482 = vadd.f32 %v474, %v473
      %v483 = vadd.f32 %v481, %v482
      %v484 = vmul.f32 %v395, %v479
      %v485 = vmul.f32 %v479, %v479
      %v486 = vsub.f32 %v483, %v485
      %v487 = vmul.f32 %v396, %v486
      %488 = vmatprep.subr.mxu0 0.0
      %489 = vmatpush1.msra.mxu0 %v392
      %490 = vmatprep.subr.mxu0 0.0
      %491 = vmatpush1.msra.mxu0 %v391
      %492 = vmatprep.subr.mxu0 0.0
      %493 = vmatpush1.msra.mxu0 %v390
      %494 = vmatprep.subr.mxu0 0.0
      %495 = vmatpush1.msra.mxu0 %v389
      %496 = vmatprep.subr.mxu0 0.0
      %497 = vmatpush1.msra.mxu0 %v388
      %498 = vmatprep.subr.mxu0 0.0
      %499 = vmatpush1.msra.mxu0 %v387
      %500 = vmatprep.subr.mxu0 0.0
      %501 = vmatpush1.msra.mxu0 %v386
      %502 = vmatprep.subr.mxu0 0.0
      %503 = vmatpush1.msra.mxu0 %v385
      %504 = vmatprep.subr.mxu0 0.0
      %505 = vmatpush1.msra.mxu0 %v384
      %506 = vmatprep.subr.mxu0 0.0
      %507 = vmatpush1.msra.mxu0 %v383
      %508 = vmatprep.subr.mxu0 0.0
      %509 = vmatpush1.msra.mxu0 %v382
      %510 = vmatprep.subr.mxu0 0.0
      %511 = vmatpush1.msra.mxu0 %v381
      %512 = vmatprep.subr.mxu0 0.0
      %513 = vmatpush1.msra.mxu0 %v380
      %514 = vmatprep.subr.mxu0 0.0
      %515 = vmatpush1.msra.mxu0 %v379
      %516 = vmatprep.subr.mxu0 0.0
      %517 = vmatpush1.msra.mxu0 %v378
      %518 = vmatprep.subr.mxu0 0.0
      %519 = vmatpush1.msra.mxu0 %v377
      %520 = vmatprep.subr.mxu0 0.0
      %521 = vmatpush2.msra.mxu0 0.0
      %522 = vmatprep.subr.mxu0 0.0
      %523 = vmatpush2.msra.mxu0 0.0
      %524 = vmatprep.subr.mxu0 0.0
      %525 = vmatpush2.msra.mxu0 0.0
      %526 = vmatprep.subr.mxu0 0.0
      %527 = vmatpush2.msra.mxu0 0.0
      %528 = vmatprep.subr.mxu0 0.0
      %529 = vmatpush2.msra.mxu0 0.0
      %530 = vmatprep.subr.mxu0 0.0
      %531 = vmatpush2.msra.mxu0 0.0
      %532 = vmatprep.subr.mxu0 0.0
      %533 = vmatpush2.msra.mxu0 0.0
      %534 = vmatprep.subr.mxu0 0.0
      %535 = vmatpush2.msra.mxu0 0.0
      %536 = vmatprep.subr.mxu0 0.0
      %537 = vmatpush2.msra.mxu0 0.0
      %538 = vmatprep.subr.mxu0 0.0
      %539 = vmatpush2.msra.mxu0 0.0
      %540 = vmatprep.subr.mxu0 0.0
      %541 = vmatpush2.msra.mxu0 0.0
      %542 = vmatprep.subr.mxu0 0.0
      %543 = vmatpush2.msra.mxu0 0.0
      %544 = vmatprep.subr.mxu0 0.0
      %545 = vmatpush2.msra.mxu0 0.0
      %546 = vmatprep.subr.mxu0 0.0
      %547 = vmatpush2.msra.mxu0 0.0
      %548 = vmatprep.subr.mxu0 0.0
      %549 = vmatpush2.msra.mxu0 0.0
      %550 = vmatprep.subr.mxu0 0.0
      %551 = vmatpush2.msra.mxu0 0.0
      %552 = vmatprep.mubr.f32.mxu0 0.0
      %553 = vmatmul.mubr.f32.gmra.mxu0 %v484
      %v554 = vpop.f32.mrf.mxu0
      %v555 = vadd.f32 0.0, %v554
      %v556 = vpop.f32.mrf.mxu0
      %557 = vmatprep.mubr.f32.mxu0 0.0
      %558 = vmatmul.mubr.f32.gmra.mxu0 %v487
      %v559 = vpop.f32.mrf.mxu0
      %v560 = vadd.f32 0.0, %v559
      %v561 = vpop.f32.mrf.mxu0
      %562 = vdwg.mxu0
      %v563 = vsub.f32 %v555, %v484
      %v564 = vsub.f32 %v560, %v487
      %v565 = vstv %s374
      %v566 = vadd.f32 %v564, %v565
      %v567 = vmax.f32 %v566, 1e-25
      %v568 = vrcp.pop %v567
      %v569 = vmul.f32 %v567, %v568
      %v570 = vsub.f32 2.0, %v569
      %v571 = vmul.f32 %v568, %v570
      %v572 = vsub.f32 %v469, %v563
      %v573 = vmul.f32 %v395, %v572
      %v574 = vmul.f32 %v573, %v571
      %v575 = vmul.f32 %v396, 4.0
      %v576 = vmul.f32 %v575, %v571
      %v577 = vrot.slane %v574, 4
      %v578 = vadd.f32 %v574, %v577
      %v579 = vrot.slane %v578, 2
      %v580 = vadd.f32 %v578, %v579
      %v581 = vrot.slane %v580, 1
      %v582 = vadd.f32 %v580, %v581
      %v583 = vrot.slane %v576, 4
      %v584 = vadd.f32 %v576, %v583
      %v585 = vrot.slane %v584, 2
      %v586 = vadd.f32 %v584, %v585
      %v587 = vrot.slane %v586, 1
      %v588 = vadd.f32 %v586, %v587
      %v589 = vsub.f32 %v582, %v574
      %v590 = vsub.f32 %v588, %v576
      %v591 = vmul.f32 %v589, 2.0
      %v592 = vadd.f32 %v591, %v590
      %v593 = vmul.f32 %v589, 4.0
      %v594 = vadd.f32 %v593, %v590
      %v595 = vmul.f32 %v589, 6.0
      %v596 = vmax.f32 %v592, %v594
      %v597 = vmax.f32 %v595, 0.0
      %v598 = vmax.f32 %v596, %v597
      %v599 = vsub.f32 0.0, %v598
      %v600 = vmul.f32 %v599, 1.442695
      %v601 = vpow.pop %v600
      %v602 = vsub.f32 %v592, %v598
      %v603 = vmul.f32 %v602, 1.442695
      %v604 = vpow.pop %v603
      %v605 = vsub.f32 %v594, %v598
      %v606 = vmul.f32 %v605, 1.442695
      %v607 = vpow.pop %v606
      %v608 = vsub.f32 %v595, %v598
      %v609 = vmul.f32 %v608, 1.442695
      %v610 = vpow.pop %v609
      %v611 = vadd.f32 %v601, %v604
      %v612 = vadd.f32 %v611, %v607
      %v613 = vadd.f32 %v612, %v610
      %v614 = vrcp.pop %v613
      %v615 = vmul.f32 %v613, %v614
      %v616 = vsub.f32 2.0, %v615
      %v617 = vmul.f32 %v614, %v616
      %v618 = vmul.f32 %v601, %v617
      %v619 = vstv %s376
      %v620 = vmul.f32 %v619, %v618
      %v621 = vstv %s375
      %v622 = vmul.f32 %v621, %v472
      %v623 = vadd.f32 %v620, %v622
      %v624 = vmul.f32 %v604, %v617
      %v625 = vmul.f32 %v619, %v624
      %v626 = vmul.f32 %v621, %v473
      %v627 = vadd.f32 %v625, %v626
      %v628 = vmul.f32 %v607, %v617
      %v629 = vmul.f32 %v619, %v628
      %v630 = vmul.f32 %v621, %v474
      %v631 = vadd.f32 %v629, %v630
      %v632 = vmul.f32 %v610, %v617
      %v633 = vmul.f32 %v619, %v632
      %v634 = vmul.f32 %v621, %v475
      %v635 = vadd.f32 %v633, %v634
      %636 = vst [vmem:[%s366] sm:$0xff] %v623
      %637 = vst [vmem:[%s366 + $0x8] sm:$0xff] %v627
      %638 = vst [vmem:[%s366 + $0x10] sm:$0xff] %v631
      %639 = vst [vmem:[%s366 + $0x18] sm:$0xff] %v635
      %v640 = vmul.f32 %v582, 2.0
      %v641 = vadd.f32 %v640, %v588
      %v642 = vmul.f32 %v582, 4.0
      %v643 = vadd.f32 %v642, %v588
      %v644 = vmul.f32 %v582, 6.0
      %vm645 = vcmask 1040384
      %v646 = vsel %vm645, 0.0, %v641
      %vm647 = vcmask 1041408
      %v648 = vsel %vm647, %v646, %v643
      %vm649 = vcmask 1042432
      %v650 = vsel %vm649, %v648, %v644
      %651 = vst [vmem:[%s372] sm:$0xf] %v650
      %s652 = scalar_lea.vmem %s352, 8
      %v653 = vld [vmem:[%s652] sm:$0xff]
      %v654 = vmul.f32 %v653, %v653
      %s655 = scalar_lea.vmem %s346, 8
      %v656 = vld [vmem:[%s655] sm:$0xff]
      %v658 = vsel %vm398, %v656, 0
      %660 = vmatprep.subr.mxu0 0.0
      %661 = vmatpush1.msra.mxu0 0.0
      %662 = vmatprep.subr.mxu0 0.0
      %663 = vmatpush1.msra.mxu0 0.0
      %664 = vmatprep.subr.mxu0 0.0
      %665 = vmatpush1.msra.mxu0 0.0
      %666 = vmatprep.subr.mxu0 0.0
      %667 = vmatpush1.msra.mxu0 0.0
      %668 = vmatprep.subr.mxu0 0.0
      %669 = vmatpush1.msra.mxu0 0.0
      %670 = vmatprep.subr.mxu0 0.0
      %671 = vmatpush1.msra.mxu0 0.0
      %672 = vmatprep.subr.mxu0 0.0
      %673 = vmatpush1.msra.mxu0 0.0
      %674 = vmatprep.subr.mxu0 0.0
      %675 = vmatpush1.msra.mxu0 0.0
      %676 = vmatprep.subr.mxu0 0.0
      %677 = vmatpush1.msra.mxu0 0.0
      %678 = vmatprep.subr.mxu0 0.0
      %679 = vmatpush1.msra.mxu0 0.0
      %680 = vmatprep.subr.mxu0 0.0
      %681 = vmatpush1.msra.mxu0 0.0
      %682 = vmatprep.subr.mxu0 0.0
      %683 = vmatpush1.msra.mxu0 0.0
      %684 = vmatprep.subr.mxu0 0.0
      %685 = vmatpush1.msra.mxu0 0.0
      %686 = vmatprep.subr.mxu0 0.0
      %687 = vmatpush1.msra.mxu0 0.0
      %688 = vmatprep.subr.mxu0 0.0
      %689 = vmatpush1.msra.mxu0 %v394
      %690 = vmatprep.subr.mxu0 0.0
      %691 = vmatpush1.msra.mxu0 %v393
      %692 = vmatprep.subr.mxu0 0.0
      %693 = vmatpush2.msra.mxu0 0.0
      %694 = vmatprep.subr.mxu0 0.0
      %695 = vmatpush2.msra.mxu0 0.0
      %696 = vmatprep.subr.mxu0 0.0
      %697 = vmatpush2.msra.mxu0 0.0
      %698 = vmatprep.subr.mxu0 0.0
      %699 = vmatpush2.msra.mxu0 0.0
      %700 = vmatprep.subr.mxu0 0.0
      %701 = vmatpush2.msra.mxu0 0.0
      %702 = vmatprep.subr.mxu0 0.0
      %703 = vmatpush2.msra.mxu0 0.0
      %704 = vmatprep.subr.mxu0 0.0
      %705 = vmatpush2.msra.mxu0 0.0
      %706 = vmatprep.subr.mxu0 0.0
      %707 = vmatpush2.msra.mxu0 0.0
      %708 = vmatprep.subr.mxu0 0.0
      %709 = vmatpush2.msra.mxu0 0.0
      %710 = vmatprep.subr.mxu0 0.0
      %711 = vmatpush2.msra.mxu0 0.0
      %712 = vmatprep.subr.mxu0 0.0
      %713 = vmatpush2.msra.mxu0 0.0
      %714 = vmatprep.subr.mxu0 0.0
      %715 = vmatpush2.msra.mxu0 0.0
      %716 = vmatprep.subr.mxu0 0.0
      %717 = vmatpush2.msra.mxu0 0.0
      %718 = vmatprep.subr.mxu0 0.0
      %719 = vmatpush2.msra.mxu0 0.0
      %720 = vmatprep.subr.mxu0 0.0
      %721 = vmatpush2.msra.mxu0 0.0
      %722 = vmatprep.subr.mxu0 0.0
      %723 = vmatpush2.msra.mxu0 0.0
      %724 = vmatprep.mubr.f32.mxu0 0.0
      %725 = vmatmul.mubr.f32.gmra.mxu0 %v658
      %v726 = vpop.f32.mrf.mxu0
      %v727 = vadd.f32 0.0, %v726
      %v728 = vpop.f32.mrf.mxu0
      %729 = vdwg.mxu0
      %s730 = scalar_lea.vmem %s359, 32
      %v731 = vld [vmem:[%s730] sm:$0xff]
      %v732 = vld [vmem:[%s730 + $0x8] sm:$0xff]
      %v733 = vld [vmem:[%s730 + $0x10] sm:$0xff]
      %v734 = vld [vmem:[%s730 + $0x18] sm:$0xff]
      %v735 = vsub.f32 %v734, %v731
      %v736 = vmul.f32 %v735, 3.0
      %v737 = vsub.f32 %v733, %v732
      %v738 = vadd.f32 %v736, %v737
      %v739 = vadd.f32 %v734, %v731
      %v740 = vmul.f32 %v739, 9.0
      %v741 = vadd.f32 %v733, %v732
      %v742 = vadd.f32 %v740, %v741
      %v743 = vmul.f32 %v653, %v738
      %v744 = vmul.f32 %v738, %v738
      %v745 = vsub.f32 %v742, %v744
      %v746 = vmul.f32 %v654, %v745
      %747 = vmatprep.subr.mxu0 0.0
      %748 = vmatpush1.msra.mxu0 %v392
      %749 = vmatprep.subr.mxu0 0.0
      %750 = vmatpush1.msra.mxu0 %v391
      %751 = vmatprep.subr.mxu0 0.0
      %752 = vmatpush1.msra.mxu0 %v390
      %753 = vmatprep.subr.mxu0 0.0
      %754 = vmatpush1.msra.mxu0 %v389
      %755 = vmatprep.subr.mxu0 0.0
      %756 = vmatpush1.msra.mxu0 %v388
      %757 = vmatprep.subr.mxu0 0.0
      %758 = vmatpush1.msra.mxu0 %v387
      %759 = vmatprep.subr.mxu0 0.0
      %760 = vmatpush1.msra.mxu0 %v386
      %761 = vmatprep.subr.mxu0 0.0
      %762 = vmatpush1.msra.mxu0 %v385
      %763 = vmatprep.subr.mxu0 0.0
      %764 = vmatpush1.msra.mxu0 %v384
      %765 = vmatprep.subr.mxu0 0.0
      %766 = vmatpush1.msra.mxu0 %v383
      %767 = vmatprep.subr.mxu0 0.0
      %768 = vmatpush1.msra.mxu0 %v382
      %769 = vmatprep.subr.mxu0 0.0
      %770 = vmatpush1.msra.mxu0 %v381
      %771 = vmatprep.subr.mxu0 0.0
      %772 = vmatpush1.msra.mxu0 %v380
      %773 = vmatprep.subr.mxu0 0.0
      %774 = vmatpush1.msra.mxu0 %v379
      %775 = vmatprep.subr.mxu0 0.0
      %776 = vmatpush1.msra.mxu0 %v378
      %777 = vmatprep.subr.mxu0 0.0
      %778 = vmatpush1.msra.mxu0 %v377
      %779 = vmatprep.subr.mxu0 0.0
      %780 = vmatpush2.msra.mxu0 0.0
      %781 = vmatprep.subr.mxu0 0.0
      %782 = vmatpush2.msra.mxu0 0.0
      %783 = vmatprep.subr.mxu0 0.0
      %784 = vmatpush2.msra.mxu0 0.0
      %785 = vmatprep.subr.mxu0 0.0
      %786 = vmatpush2.msra.mxu0 0.0
      %787 = vmatprep.subr.mxu0 0.0
      %788 = vmatpush2.msra.mxu0 0.0
      %789 = vmatprep.subr.mxu0 0.0
      %790 = vmatpush2.msra.mxu0 0.0
      %791 = vmatprep.subr.mxu0 0.0
      %792 = vmatpush2.msra.mxu0 0.0
      %793 = vmatprep.subr.mxu0 0.0
      %794 = vmatpush2.msra.mxu0 0.0
      %795 = vmatprep.subr.mxu0 0.0
      %796 = vmatpush2.msra.mxu0 0.0
      %797 = vmatprep.subr.mxu0 0.0
      %798 = vmatpush2.msra.mxu0 0.0
      %799 = vmatprep.subr.mxu0 0.0
      %800 = vmatpush2.msra.mxu0 0.0
      %801 = vmatprep.subr.mxu0 0.0
      %802 = vmatpush2.msra.mxu0 0.0
      %803 = vmatprep.subr.mxu0 0.0
      %804 = vmatpush2.msra.mxu0 0.0
      %805 = vmatprep.subr.mxu0 0.0
      %806 = vmatpush2.msra.mxu0 0.0
      %807 = vmatprep.subr.mxu0 0.0
      %808 = vmatpush2.msra.mxu0 0.0
      %809 = vmatprep.subr.mxu0 0.0
      %810 = vmatpush2.msra.mxu0 0.0
      %811 = vmatprep.mubr.f32.mxu0 0.0
      %812 = vmatmul.mubr.f32.gmra.mxu0 %v743
      %v813 = vpop.f32.mrf.mxu0
      %v814 = vadd.f32 0.0, %v813
      %v815 = vpop.f32.mrf.mxu0
      %816 = vmatprep.mubr.f32.mxu0 0.0
      %817 = vmatmul.mubr.f32.gmra.mxu0 %v746
      %v818 = vpop.f32.mrf.mxu0
      %v819 = vadd.f32 0.0, %v818
      %v820 = vpop.f32.mrf.mxu0
      %821 = vdwg.mxu0
      %v822 = vsub.f32 %v814, %v743
      %v823 = vsub.f32 %v819, %v746
      %v824 = vadd.f32 %v823, %v565
      %v825 = vmax.f32 %v824, 1e-25
      %v826 = vrcp.pop %v825
      %v827 = vmul.f32 %v825, %v826
      %v828 = vsub.f32 2.0, %v827
      %v829 = vmul.f32 %v826, %v828
      %v830 = vsub.f32 %v727, %v822
      %v831 = vmul.f32 %v653, %v830
      %v832 = vmul.f32 %v831, %v829
      %v833 = vmul.f32 %v654, 4.0
      %v834 = vmul.f32 %v833, %v829
      %v835 = vrot.slane %v832, 4
      %v836 = vadd.f32 %v832, %v835
      %v837 = vrot.slane %v836, 2
      %v838 = vadd.f32 %v836, %v837
      %v839 = vrot.slane %v838, 1
      %v840 = vadd.f32 %v838, %v839
      %v841 = vrot.slane %v834, 4
      %v842 = vadd.f32 %v834, %v841
      %v843 = vrot.slane %v842, 2
      %v844 = vadd.f32 %v842, %v843
      %v845 = vrot.slane %v844, 1
      %v846 = vadd.f32 %v844, %v845
      %v847 = vsub.f32 %v840, %v832
      %v848 = vsub.f32 %v846, %v834
      %v849 = vmul.f32 %v847, 2.0
      %v850 = vadd.f32 %v849, %v848
      %v851 = vmul.f32 %v847, 4.0
      %v852 = vadd.f32 %v851, %v848
      %v853 = vmul.f32 %v847, 6.0
      %v854 = vmax.f32 %v850, %v852
      %v855 = vmax.f32 %v853, 0.0
      %v856 = vmax.f32 %v854, %v855
      %v857 = vsub.f32 0.0, %v856
      %v858 = vmul.f32 %v857, 1.442695
      %v859 = vpow.pop %v858
      %v860 = vsub.f32 %v850, %v856
      %v861 = vmul.f32 %v860, 1.442695
      %v862 = vpow.pop %v861
      %v863 = vsub.f32 %v852, %v856
      %v864 = vmul.f32 %v863, 1.442695
      %v865 = vpow.pop %v864
      %v866 = vsub.f32 %v853, %v856
      %v867 = vmul.f32 %v866, 1.442695
      %v868 = vpow.pop %v867
      %v869 = vadd.f32 %v859, %v862
      %v870 = vadd.f32 %v869, %v865
      %v871 = vadd.f32 %v870, %v868
      %v872 = vrcp.pop %v871
      %v873 = vmul.f32 %v871, %v872
      %v874 = vsub.f32 2.0, %v873
      %v875 = vmul.f32 %v872, %v874
      %v876 = vmul.f32 %v859, %v875
      %v877 = vmul.f32 %v619, %v876
      %v878 = vmul.f32 %v621, %v731
      %v879 = vadd.f32 %v877, %v878
      %v880 = vmul.f32 %v862, %v875
      %v881 = vmul.f32 %v619, %v880
      %v882 = vmul.f32 %v621, %v732
      %v883 = vadd.f32 %v881, %v882
      %v884 = vmul.f32 %v865, %v875
      %v885 = vmul.f32 %v619, %v884
      %v886 = vmul.f32 %v621, %v733
      %v887 = vadd.f32 %v885, %v886
      %v888 = vmul.f32 %v868, %v875
      %v889 = vmul.f32 %v619, %v888
      %v890 = vmul.f32 %v621, %v734
      %v891 = vadd.f32 %v889, %v890
      %s892 = scalar_lea.vmem %s366, 32
      %893 = vst [vmem:[%s892] sm:$0xff] %v879
      %894 = vst [vmem:[%s892 + $0x8] sm:$0xff] %v883
      %895 = vst [vmem:[%s892 + $0x10] sm:$0xff] %v887
      %896 = vst [vmem:[%s892 + $0x18] sm:$0xff] %v891
      %v897 = vmul.f32 %v840, 2.0
      %v898 = vadd.f32 %v897, %v846
      %v899 = vmul.f32 %v840, 4.0
      %v900 = vadd.f32 %v899, %v846
      %v901 = vmul.f32 %v840, 6.0
      %v902 = vsel %vm645, 0.0, %v898
      %v903 = vsel %vm647, %v902, %v900
      %v904 = vsel %vm649, %v903, %v901
      %s905 = scalar_lea.vmem %s372, 4
      %906 = vst [vmem:[%s905] sm:$0xf] %v904
      %s907 = smul.u32 2, %s22
      %p908 = scmp.lt.s32.totalorder %s907, 3
      %s909 = scalar_select %p908, %s907, 3
      %s910 = smul.addr %s909, 4
      %s911 = smul.addr %s910, 8
      %s912 = scalar_lea.vmem %s7, %s911
      %s913 = smul.u32 2, %s22
      %p914 = scmp.lt.s32.totalorder %s913, 3
      %s915 = scalar_select %p914, %s913, 3
      %s916 = smul.addr %s915, 4
      %s917 = scalar_lea.vmem %s8, %s916
      // Predicated region
      $region49: #{dbp_layer.1} parent=47 // pred_check
        %p918 = pneg %p202
      $region50: #{dbp_layer.1} parent=47 // pred_check_branch
        %920 = sbr.rel (%p918) target = $region52
      $region51: #{dbp_layer.1} parent=47 // pred_region
        %s921 = smul.u32 2, %s22
      $region52: #{dbp_layer.1} parent=47 // pred_fallthru
        _
      // Predicated region
      $region53: #{dbp_layer.1} parent=47 // pred_check
        %p922 = pneg %p228
      $region54: #{dbp_layer.1} parent=47 // pred_check_branch
        %924 = sbr.rel (%p922) target = $region56
      $region55: #{dbp_layer.1} parent=47 // pred_region
        %s925 = smul.u32 2, %s22
      $region56: #{dbp_layer.1} parent=47 // pred_fallthru
        _
    $region48: #{dbp_layer.1} parent=5 // pred_fallthru
      _
    %p926 = scmp.le.s32.totalorder 2, %s17
    // Predicated region
    $region57: #{dbp_layer.1} parent=5 // pred_check
      %p927 = pneg %p926
    $region58: #{dbp_layer.1} parent=5 // pred_check_branch
      %929 = sbr.rel (%p927) target = $region60
    $region59: #{dbp_layer.1} parent=5 // pred_region
      %s930 = ssub.s32 %s17, 2
      // Predicated region
      $region61: #{dbp_layer.1} parent=59 // pred_check
        %p931 = pneg %p208
      $region62: #{dbp_layer.1} parent=59 // pred_check_branch
        %933 = sbr.rel (%p931) target = $region64
      $region63: #{dbp_layer.1} parent=59 // pred_region
        %s934 = smul.u32 2, %s23
        %p935 = scmp.lt.s32.totalorder %s934, 3
        %s936 = scalar_select %p935, %s934, 3
        %s937 = smul.addr %s936, 4
        %s938 = smul.addr %s937, 8
        %s939 = scalar_lea.vmem %s7, %s938
      $region64: #{dbp_layer.1} parent=59 // pred_fallthru
        _
      // Predicated region
      $region65: #{dbp_layer.1} parent=59 // pred_check
        %p940 = pneg %p234
      $region66: #{dbp_layer.1} parent=59 // pred_check_branch
        %942 = sbr.rel (%p940) target = $region68
      $region67: #{dbp_layer.1} parent=59 // pred_region
        %s943 = smul.u32 2, %s23
        %p944 = scmp.lt.s32.totalorder %s943, 3
        %s945 = scalar_select %p944, %s943, 3
        %s946 = smul.addr %s945, 4
        %s947 = scalar_lea.vmem %s8, %s946
      $region68: #{dbp_layer.1} parent=59 // pred_fallthru
        _
    $region60: #{dbp_layer.1} parent=5 // pred_fallthru
      _
  $region6: #{dbp_layer.1} parent=0 // loop_footer
    %s21 = sadd.s32 1, %s17
  $region7: #{dbp_layer.1} parent=0 // loop_footer_branch
    %16 = sbr.rel target = $region3
  $region8: #{dbp_layer.1} parent=0 // loop_exit
    _

</llo_original>
